<compile_context>
chip_gen: v7x
topology: tpu7x:2x2x1
jax: 0.10.0
libtpu: 0.0.40
codegen_flags: <defaults>
</compile_context>

<pallas_src>
import functools

import jax
import jax.numpy as jnp
from jax.experimental import pallas as pl
from jax.experimental.pallas import tpu as pltpu


DIMS = [(16, 32), (32, 64), (64, 128), (128, 64), (64, 1)]     # (in, out) per layer
CHUNK = 256                                                    # lanes per inner sub-chunk


def _tile_and_vmem_budget():
    """Generation-aware (max batch-tile, scoped-VMEM limit)."""
    try:
        kind = jax.devices()[0].device_kind.lower()
    except Exception:
        kind = ""
    if "v5 lite" in kind or "v5e" in kind:
        return 4096, 40 << 20      # v5e: 16 MiB scoped default -> raise; modest tiles
    if "v7" in kind:
        return 8192, 40 << 20      # v7x: 64 MiB physical VMEM -> leave headroom
    return 8192, 64 << 20          # v6e & others: 128 MiB physical


def property_mlp_kernel(xT_ref,
                        w1_ref, b1_ref,
                        w2_ref, b2_ref,
                        w3_ref, b3_ref,
                        w4_ref, b4_ref,
                        w5_ref, b5_ref,
                        o_ref):
    """One batch tile; batch on lanes, features on sublanes, 256-lane inner chunks."""
    n_chunks = xT_ref.shape[1] // CHUNK          # static

    # Hoist weight/bias loads out of the chunk loop (tiny, stay in vregs / hot VMEM).
    w1, b1 = w1_ref[...], b1_ref[...]
    w2, b2 = w2_ref[...], b2_ref[...]
    w3, b3 = w3_ref[...], b3_ref[...]
    w4, b4 = w4_ref[...], b4_ref[...]
    w5, b5 = w5_ref[...], b5_ref[...]

    def body(c, carry):
        off = pl.multiple_of(c * CHUNK, CHUNK)
        h = xT_ref[:, pl.ds(off, CHUNK)]                                   # [16, 256] bf16

        h = jnp.dot(w1, h, preferred_element_type=jnp.float32) + b1
        h = jnp.maximum(h, 0.0).astype(jnp.bfloat16)                       # [32, 256]

        h = jnp.dot(w2, h, preferred_element_type=jnp.float32) + b2
        h = jnp.maximum(h, 0.0).astype(jnp.bfloat16)                       # [64, 256]

        h = jnp.dot(w3, h, preferred_element_type=jnp.float32) + b3
        h = jnp.maximum(h, 0.0).astype(jnp.bfloat16)                       # [128, 256]

        h = jnp.dot(w4, h, preferred_element_type=jnp.float32) + b4
        h = jnp.maximum(h, 0.0)                                            # [64, 256] f32

        # Final 64 -> 1 layer: N=1 matmul would waste the MXU; VPU multiply + sublane
        # (XLU) reduce instead.  Output row is lane-dense.
        o = jnp.sum(h * w5, axis=0, keepdims=True) + b5                    # [1, 256] f32
        o_ref[:, pl.ds(off, CHUNK)] = o.astype(o_ref.dtype)
        return carry

    jax.lax.fori_loop(0, n_chunks, body, 0, unroll=2)


@functools.partial(jax.jit, static_argnames=("tb",))
def property_mlp(x, params, *, tb=None):
    """x: [B, 16] float32; params: list of (W[out, in], b[out]) float32 (PyTorch layout)."""
    B = x.shape[0]
    tb_max, vmem_limit = _tile_and_vmem_budget()

    if tb is None:
        # >= 512 rows/tile to amortize per-step overhead; split across 2 TCs (v7x) when
        # the batch is big enough; cap against the per-generation VMEM budget.
        per_core = -(-B // 2)
        tb = min(tb_max, max(512, -(-per_core // 512) * 512))
    tb = max(CHUNK, -(-tb // CHUNK) * CHUNK)     # keep tb a multiple of the inner chunk

    n_tiles = -(-B // tb)
    b_pad = n_tiles * tb

    # Single fused pad + transpose + cast pass: batch onto the lane axis, bf16 for the MXU.
    xT = jnp.pad(x, ((0, b_pad - B), (0, 0))).T.astype(jnp.bfloat16)       # [16, b_pad]

    (w1, b1), (w2, b2), (w3, b3), (w4, b4), (w5, b5) = params
    operands = [
        xT,
        w1.astype(jnp.bfloat16), b1.reshape(-1, 1),
        w2.astype(jnp.bfloat16), b2.reshape(-1, 1),
        w3.astype(jnp.bfloat16), b3.reshape(-1, 1),
        w4.astype(jnp.bfloat16), b4.reshape(-1, 1),
        w5.reshape(-1, 1).astype(jnp.float32),   # [64, 1] stays f32 (VPU path)
        b5.reshape(1, 1),
    ]

    # Weights/biases: whole-array blocks with constant index maps -> DMA'd once,
    # VMEM-resident across all batch tiles (~40 KiB).  x / out tiles stream.
    resident = lambda a: pl.BlockSpec(a.shape, lambda i: (0, 0))
    in_specs = ([pl.BlockSpec((16, tb), lambda i: (0, i))]
                + [resident(a) for a in operands[1:]])

    flops = 2 * B * sum(din * dout for din, dout in DIMS)
    bytes_accessed = (x.size * 2 + B * 4
                      + sum(w.size * 2 + b.size * 4 for (w, b) in params))
    cost = pl.CostEstimate(flops=flops, transcendentals=0,
                           bytes_accessed=int(bytes_accessed))

    oT = pl.pallas_call(
        property_mlp_kernel,
        out_shape=jax.ShapeDtypeStruct((1, b_pad), jnp.float32),
        grid=(n_tiles,),
        in_specs=in_specs,
        out_specs=pl.BlockSpec((1, tb), lambda i: (0, i)),
        compiler_params=pltpu.CompilerParams(
            dimension_semantics=("parallel",),    # batch tiles shard across TCs on v7x
            vmem_limit_bytes=vmem_limit),
        cost_estimate=cost,
    )(*operands)

    return oT[0, :B].reshape(B, 1)


def init_params(key):
    """PyTorch nn.Linear-style params: W [out, in], b [out], U(-1/sqrt(in), 1/sqrt(in))."""
    params = []
    for i, (din, dout) in enumerate(DIMS):
        kw, kb = jax.random.split(jax.random.fold_in(key, i))
        bound = 1.0 / jnp.sqrt(jnp.float32(din))
        w = jax.random.uniform(kw, (dout, din), jnp.float32, -bound, bound)
        b = jax.random.uniform(kb, (dout,), jnp.float32, -bound, bound)
        params.append((w, b))
    return params


def property_mlp_ref(x, params):
    """Pure-JAX reference with the same numerics as the kernel (bf16 MXU inputs, f32 acc)."""
    h = x.astype(jnp.bfloat16)
    for i, (w, b) in enumerate(params[:-1]):
        h = jnp.dot(h, w.T.astype(jnp.bfloat16), preferred_element_type=jnp.float32) + b
        h = jnp.maximum(h, 0.0)
        if i < len(params) - 2:          # last hidden layer stays f32 for the final reduce
            h = h.astype(jnp.bfloat16)
    w5, b5 = params[-1]
    return jnp.sum(h * w5[0][None, :], axis=-1, keepdims=True) + b5


if __name__ == "__main__":
    key = jax.random.PRNGKey(0)
    kx, kp = jax.random.split(key)

    B = 8
    x = jax.random.normal(kx, (B, 16), dtype=jnp.float32)
    params = init_params(kp)

    out = jax.block_until_ready(property_mlp(x, params))
    ref = property_mlp_ref(x, params)

    assert out.shape == (B, 1), out.shape
    assert jnp.allclose(out, ref, atol=2e-3, rtol=2e-3), (
        "mismatch vs JAX reference; max abs err = "
        + str(float(jnp.max(jnp.abs(out - ref)))))

    print("KERNEL_OK")
</pallas_src>

<mosaic_0001>
module attributes {stable_mosaic.version = 11 : i64} {
  func.func @property_mlp_kernel(%arg0: i32, %arg1: memref<16x512xbf16, #tpu.memory_space<vmem>>, %arg2: memref<32x16xbf16, #tpu.memory_space<vmem>>, %arg3: memref<32x1xf32, #tpu.memory_space<vmem>>, %arg4: memref<64x32xbf16, #tpu.memory_space<vmem>>, %arg5: memref<64x1xf32, #tpu.memory_space<vmem>>, %arg6: memref<128x64xbf16, #tpu.memory_space<vmem>>, %arg7: memref<128x1xf32, #tpu.memory_space<vmem>>, %arg8: memref<64x128xbf16, #tpu.memory_space<vmem>>, %arg9: memref<64x1xf32, #tpu.memory_space<vmem>>, %arg10: memref<64x1xf32, #tpu.memory_space<vmem>>, %arg11: memref<1x1xf32, #tpu.memory_space<vmem>>, %arg12: memref<1x512xf32, #tpu.memory_space<vmem>>) attributes {dimension_semantics = [#tpu.dimension_semantics<parallel>], iteration_bounds = array<i64: 1>, scalar_prefetch = 0 : i64, scratch_operands = 0 : i64, tpu.core_type = #tpu.core_type<tc>, window_params = [{transform_indices = @transform_0, window_bounds = array<i64: 16, 512>}, {pipeline_mode = #tpu.pipeline_mode<synchronous>, transform_indices = @transform_1, window_bounds = array<i64: 32, 16>}, {pipeline_mode = #tpu.pipeline_mode<synchronous>, transform_indices = @transform_2, window_bounds = array<i64: 32, 1>}, {pipeline_mode = #tpu.pipeline_mode<synchronous>, transform_indices = @transform_3, window_bounds = array<i64: 64, 32>}, {pipeline_mode = #tpu.pipeline_mode<synchronous>, transform_indices = @transform_4, window_bounds = array<i64: 64, 1>}, {pipeline_mode = #tpu.pipeline_mode<synchronous>, transform_indices = @transform_5, window_bounds = array<i64: 128, 64>}, {pipeline_mode = #tpu.pipeline_mode<synchronous>, transform_indices = @transform_6, window_bounds = array<i64: 128, 1>}, {pipeline_mode = #tpu.pipeline_mode<synchronous>, transform_indices = @transform_7, window_bounds = array<i64: 64, 128>}, {pipeline_mode = #tpu.pipeline_mode<synchronous>, transform_indices = @transform_8, window_bounds = array<i64: 64, 1>}, {pipeline_mode = #tpu.pipeline_mode<synchronous>, transform_indices = @transform_9, window_bounds = array<i64: 64, 1>}, {pipeline_mode = #tpu.pipeline_mode<synchronous>, transform_indices = @transform_10, window_bounds = array<i64: 1, 1>}, {transform_indices = @transform_11, window_bounds = array<i64: 1, 512>}]} {
    %c0 = arith.constant 0 : index
    %c0_0 = arith.constant 0 : index
    %0 = vector.load %arg2[%c0, %c0_0] : memref<32x16xbf16, #tpu.memory_space<vmem>>, vector<32x16xbf16>
    %c0_1 = arith.constant 0 : index
    %c0_2 = arith.constant 0 : index
    %1 = vector.load %arg3[%c0_1, %c0_2] : memref<32x1xf32, #tpu.memory_space<vmem>>, vector<32x1xf32>
    %c0_3 = arith.constant 0 : index
    %c0_4 = arith.constant 0 : index
    %2 = vector.load %arg4[%c0_3, %c0_4] : memref<64x32xbf16, #tpu.memory_space<vmem>>, vector<64x32xbf16>
    %c0_5 = arith.constant 0 : index
    %c0_6 = arith.constant 0 : index
    %3 = vector.load %arg5[%c0_5, %c0_6] : memref<64x1xf32, #tpu.memory_space<vmem>>, vector<64x1xf32>
    %c0_7 = arith.constant 0 : index
    %c0_8 = arith.constant 0 : index
    %4 = vector.load %arg6[%c0_7, %c0_8] : memref<128x64xbf16, #tpu.memory_space<vmem>>, vector<128x64xbf16>
    %c0_9 = arith.constant 0 : index
    %c0_10 = arith.constant 0 : index
    %5 = vector.load %arg7[%c0_9, %c0_10] : memref<128x1xf32, #tpu.memory_space<vmem>>, vector<128x1xf32>
    %c0_11 = arith.constant 0 : index
    %c0_12 = arith.constant 0 : index
    %6 = vector.load %arg8[%c0_11, %c0_12] : memref<64x128xbf16, #tpu.memory_space<vmem>>, vector<64x128xbf16>
    %c0_13 = arith.constant 0 : index
    %c0_14 = arith.constant 0 : index
    %7 = vector.load %arg9[%c0_13, %c0_14] : memref<64x1xf32, #tpu.memory_space<vmem>>, vector<64x1xf32>
    %c0_15 = arith.constant 0 : index
    %c0_16 = arith.constant 0 : index
    %8 = vector.load %arg10[%c0_15, %c0_16] : memref<64x1xf32, #tpu.memory_space<vmem>>, vector<64x1xf32>
    %c0_17 = arith.constant 0 : index
    %c0_18 = arith.constant 0 : index
    %9 = vector.load %arg11[%c0_17, %c0_18] : memref<1x1xf32, #tpu.memory_space<vmem>>, vector<1x1xf32>
    %c0_i32 = arith.constant 0 : i32
    %c256_i32 = arith.constant 256 : i32
    %10 = arith.muli %c0_i32, %c256_i32 : i32
    %11 = tpu.assume_multiple %10, 256 : i32
    %c0_19 = arith.constant 0 : index
    %12 = arith.index_cast %11 : i32 to index
    %13 = vector.load %arg1[%c0_19, %12] : memref<16x512xbf16, #tpu.memory_space<vmem>>, vector<16x256xbf16>
    %cst = arith.constant dense<0.000000e+00> : vector<32x256xf32>
    %14 = tpu.matmul %0, %13, %cst {dimension_numbers = #tpu.dot_dimension_numbers<[1], [0], [0], [1], [0, 0, 1, 1], [], []>} : vector<32x16xbf16>, vector<16x256xbf16>, vector<32x256xf32> -> vector<32x256xf32>
    %15 = vector.broadcast %1 : vector<32x1xf32> to vector<32x256xf32>
    %16 = arith.addf %14, %15 : vector<32x256xf32>
    %cst_20 = arith.constant 0.000000e+00 : f32
    %17 = vector.broadcast %cst_20 : f32 to vector<32x256xf32>
    %18 = arith.maximumf %16, %17 : vector<32x256xf32>
    %19 = arith.truncf %18 : vector<32x256xf32> to vector<32x256xbf16>
    %cst_21 = arith.constant dense<0.000000e+00> : vector<64x256xf32>
    %20 = tpu.matmul %2, %19, %cst_21 {dimension_numbers = #tpu.dot_dimension_numbers<[1], [0], [0], [1], [0, 0, 1, 1], [], []>} : vector<64x32xbf16>, vector<32x256xbf16>, vector<64x256xf32> -> vector<64x256xf32>
    %21 = vector.broadcast %3 : vector<64x1xf32> to vector<64x256xf32>
    %22 = arith.addf %20, %21 : vector<64x256xf32>
    %cst_22 = arith.constant 0.000000e+00 : f32
    %23 = vector.broadcast %cst_22 : f32 to vector<64x256xf32>
    %24 = arith.maximumf %22, %23 : vector<64x256xf32>
    %25 = arith.truncf %24 : vector<64x256xf32> to vector<64x256xbf16>
    %cst_23 = arith.constant dense<0.000000e+00> : vector<128x256xf32>
    %26 = tpu.matmul %4, %25, %cst_23 {dimension_numbers = #tpu.dot_dimension_numbers<[1], [0], [0], [1], [0, 0, 1, 1], [], []>} : vector<128x64xbf16>, vector<64x256xbf16>, vector<128x256xf32> -> vector<128x256xf32>
    %27 = vector.broadcast %5 : vector<128x1xf32> to vector<128x256xf32>
    %28 = arith.addf %26, %27 : vector<128x256xf32>
    %cst_24 = arith.constant 0.000000e+00 : f32
    %29 = vector.broadcast %cst_24 : f32 to vector<128x256xf32>
    %30 = arith.maximumf %28, %29 : vector<128x256xf32>
    %31 = arith.truncf %30 : vector<128x256xf32> to vector<128x256xbf16>
    %cst_25 = arith.constant dense<0.000000e+00> : vector<64x256xf32>
    %32 = tpu.matmul %6, %31, %cst_25 {dimension_numbers = #tpu.dot_dimension_numbers<[1], [0], [0], [1], [0, 0, 1, 1], [], []>} : vector<64x128xbf16>, vector<128x256xbf16>, vector<64x256xf32> -> vector<64x256xf32>
    %33 = vector.broadcast %7 : vector<64x1xf32> to vector<64x256xf32>
    %34 = arith.addf %32, %33 : vector<64x256xf32>
    %cst_26 = arith.constant 0.000000e+00 : f32
    %35 = vector.broadcast %cst_26 : f32 to vector<64x256xf32>
    %36 = arith.maximumf %34, %35 : vector<64x256xf32>
    %37 = vector.broadcast %8 : vector<64x1xf32> to vector<64x256xf32>
    %38 = arith.mulf %36, %37 : vector<64x256xf32>
    %cst_27 = arith.constant dense<0.000000e+00> : vector<256xf32>
    %39 = vector.multi_reduction <add>, %38, %cst_27 [0] : vector<64x256xf32> to vector<256xf32>
    %40 = vector.shape_cast %39 : vector<256xf32> to vector<1x256xf32>
    %41 = vector.broadcast %9 : vector<1x1xf32> to vector<1x256xf32>
    %42 = arith.addf %40, %41 : vector<1x256xf32>
    %c0_28 = arith.constant 0 : index
    %43 = arith.index_cast %11 : i32 to index
    %44 = vector.load %arg12[%c0_28, %43] : memref<1x512xf32, #tpu.memory_space<vmem>>, vector<1x256xf32>
    tpu.vector_store %arg12[%c0_28, %43], %42 {strides = array<i32>} : memref<1x512xf32, #tpu.memory_space<vmem>>, vector<1x256xf32>,
    %c1_i32 = arith.constant 1 : i32
    %c256_i32_29 = arith.constant 256 : i32
    %45 = arith.muli %c1_i32, %c256_i32_29 : i32
    %46 = tpu.assume_multiple %45, 256 : i32
    %c0_30 = arith.constant 0 : index
    %47 = arith.index_cast %46 : i32 to index
    %48 = vector.load %arg1[%c0_30, %47] : memref<16x512xbf16, #tpu.memory_space<vmem>>, vector<16x256xbf16>
    %cst_31 = arith.constant dense<0.000000e+00> : vector<32x256xf32>
    %49 = tpu.matmul %0, %48, %cst_31 {dimension_numbers = #tpu.dot_dimension_numbers<[1], [0], [0], [1], [0, 0, 1, 1], [], []>} : vector<32x16xbf16>, vector<16x256xbf16>, vector<32x256xf32> -> vector<32x256xf32>
    %50 = vector.broadcast %1 : vector<32x1xf32> to vector<32x256xf32>
    %51 = arith.addf %49, %50 : vector<32x256xf32>
    %cst_32 = arith.constant 0.000000e+00 : f32
    %52 = vector.broadcast %cst_32 : f32 to vector<32x256xf32>
    %53 = arith.maximumf %51, %52 : vector<32x256xf32>
    %54 = arith.truncf %53 : vector<32x256xf32> to vector<32x256xbf16>
    %cst_33 = arith.constant dense<0.000000e+00> : vector<64x256xf32>
    %55 = tpu.matmul %2, %54, %cst_33 {dimension_numbers = #tpu.dot_dimension_numbers<[1], [0], [0], [1], [0, 0, 1, 1], [], []>} : vector<64x32xbf16>, vector<32x256xbf16>, vector<64x256xf32> -> vector<64x256xf32>
    %56 = vector.broadcast %3 : vector<64x1xf32> to vector<64x256xf32>
    %57 = arith.addf %55, %56 : vector<64x256xf32>
    %cst_34 = arith.constant 0.000000e+00 : f32
    %58 = vector.broadcast %cst_34 : f32 to vector<64x256xf32>
    %59 = arith.maximumf %57, %58 : vector<64x256xf32>
    %60 = arith.truncf %59 : vector<64x256xf32> to vector<64x256xbf16>
    %cst_35 = arith.constant dense<0.000000e+00> : vector<128x256xf32>
    %61 = tpu.matmul %4, %60, %cst_35 {dimension_numbers = #tpu.dot_dimension_numbers<[1], [0], [0], [1], [0, 0, 1, 1], [], []>} : vector<128x64xbf16>, vector<64x256xbf16>, vector<128x256xf32> -> vector<128x256xf32>
    %62 = vector.broadcast %5 : vector<128x1xf32> to vector<128x256xf32>
    %63 = arith.addf %61, %62 : vector<128x256xf32>
    %cst_36 = arith.constant 0.000000e+00 : f32
    %64 = vector.broadcast %cst_36 : f32 to vector<128x256xf32>
    %65 = arith.maximumf %63, %64 : vector<128x256xf32>
    %66 = arith.truncf %65 : vector<128x256xf32> to vector<128x256xbf16>
    %cst_37 = arith.constant dense<0.000000e+00> : vector<64x256xf32>
    %67 = tpu.matmul %6, %66, %cst_37 {dimension_numbers = #tpu.dot_dimension_numbers<[1], [0], [0], [1], [0, 0, 1, 1], [], []>} : vector<64x128xbf16>, vector<128x256xbf16>, vector<64x256xf32> -> vector<64x256xf32>
    %68 = vector.broadcast %7 : vector<64x1xf32> to vector<64x256xf32>
    %69 = arith.addf %67, %68 : vector<64x256xf32>
    %cst_38 = arith.constant 0.000000e+00 : f32
    %70 = vector.broadcast %cst_38 : f32 to vector<64x256xf32>
    %71 = arith.maximumf %69, %70 : vector<64x256xf32>
    %72 = vector.broadcast %8 : vector<64x1xf32> to vector<64x256xf32>
    %73 = arith.mulf %71, %72 : vector<64x256xf32>
    %cst_39 = arith.constant dense<0.000000e+00> : vector<256xf32>
    %74 = vector.multi_reduction <add>, %73, %cst_39 [0] : vector<64x256xf32> to vector<256xf32>
    %75 = vector.shape_cast %74 : vector<256xf32> to vector<1x256xf32>
    %76 = vector.broadcast %9 : vector<1x1xf32> to vector<1x256xf32>
    %77 = arith.addf %75, %76 : vector<1x256xf32>
    %c0_40 = arith.constant 0 : index
    %78 = arith.index_cast %46 : i32 to index
    %79 = vector.load %arg12[%c0_40, %78] : memref<1x512xf32, #tpu.memory_space<vmem>>, vector<1x256xf32>
    tpu.vector_store %arg12[%c0_40, %78], %77 {strides = array<i32>} : memref<1x512xf32, #tpu.memory_space<vmem>>, vector<1x256xf32>,
    %c2_i32 = arith.constant 2 : i32
    return
  }
  func.func @transform_0(%arg0: i32) -> (i32, i32) {
    %c0_i32 = arith.constant 0 : i32
    %c0_i32_0 = arith.constant 0 : i32
    return %c0_i32, %arg0 : i32, i32
  }
  func.func @transform_1(%arg0: i32) -> (i32, i32) {
    %c0_i32 = arith.constant 0 : i32
    %c0_i32_0 = arith.constant 0 : i32
    %c0_i32_1 = arith.constant 0 : i32
    return %c0_i32, %c0_i32_0 : i32, i32
  }
  func.func @transform_2(%arg0: i32) -> (i32, i32) {
    %c0_i32 = arith.constant 0 : i32
    %c0_i32_0 = arith.constant 0 : i32
    %c0_i32_1 = arith.constant 0 : i32
    return %c0_i32, %c0_i32_0 : i32, i32
  }
  func.func @transform_3(%arg0: i32) -> (i32, i32) {
    %c0_i32 = arith.constant 0 : i32
    %c0_i32_0 = arith.constant 0 : i32
    %c0_i32_1 = arith.constant 0 : i32
    return %c0_i32, %c0_i32_0 : i32, i32
  }
  func.func @transform_4(%arg0: i32) -> (i32, i32) {
    %c0_i32 = arith.constant 0 : i32
    %c0_i32_0 = arith.constant 0 : i32
    %c0_i32_1 = arith.constant 0 : i32
    return %c0_i32, %c0_i32_0 : i32, i32
  }
  func.func @transform_5(%arg0: i32) -> (i32, i32) {
    %c0_i32 = arith.constant 0 : i32
    %c0_i32_0 = arith.constant 0 : i32
    %c0_i32_1 = arith.constant 0 : i32
    return %c0_i32, %c0_i32_0 : i32, i32
  }
  func.func @transform_6(%arg0: i32) -> (i32, i32) {
    %c0_i32 = arith.constant 0 : i32
    %c0_i32_0 = arith.constant 0 : i32
    %c0_i32_1 = arith.constant 0 : i32
    return %c0_i32, %c0_i32_0 : i32, i32
  }
  func.func @transform_7(%arg0: i32) -> (i32, i32) {
    %c0_i32 = arith.constant 0 : i32
    %c0_i32_0 = arith.constant 0 : i32
    %c0_i32_1 = arith.constant 0 : i32
    return %c0_i32, %c0_i32_0 : i32, i32
  }
  func.func @transform_8(%arg0: i32) -> (i32, i32) {
    %c0_i32 = arith.constant 0 : i32
    %c0_i32_0 = arith.constant 0 : i32
    %c0_i32_1 = arith.constant 0 : i32
    return %c0_i32, %c0_i32_0 : i32, i32
  }
  func.func @transform_9(%arg0: i32) -> (i32, i32) {
    %c0_i32 = arith.constant 0 : i32
    %c0_i32_0 = arith.constant 0 : i32
    %c0_i32_1 = arith.constant 0 : i32
    return %c0_i32, %c0_i32_0 : i32, i32
  }
  func.func @transform_10(%arg0: i32) -> (i32, i32) {
    %c0_i32 = arith.constant 0 : i32
    %c0_i32_0 = arith.constant 0 : i32
    %c0_i32_1 = arith.constant 0 : i32
    return %c0_i32, %c0_i32_0 : i32, i32
  }
  func.func @transform_11(%arg0: i32) -> (i32, i32) {
    %c0_i32 = arith.constant 0 : i32
    %c0_i32_0 = arith.constant 0 : i32
    return %c0_i32, %arg0 : i32, i32
  }
}

</mosaic_0001>

<llo_original>
// kernel: property_mlp.1
$region0: #{property_mlp.1}
  #allocation0 [shape = 'u32[]', space=smem, size = 0x4, offset = 0x4, fixed_abs, tag = 'smem constant byte address 0x4 - core index']
  #allocation1 [shape = 'u32[144,128]{1,0:T(1,128)}', space=vmem, size = 0x12000, scoped, tag = 'internal scratch']
  #allocation2 [shape = 'f32[1,1]{1,0:T(1,128)S(1)}', space=vmem, size = 0x200, scoped, tag = 'scoped memory for property_mlp.1']
  %s0 = inlined_call_operand.hbm [shape: bf16[16,512], index: 0, kind: input, shape index: {}]
  %s1 = inlined_call_operand.hbm [shape: bf16[32,16], index: 1, kind: input, shape index: {}]
  %s2 = inlined_call_operand.hbm [shape: f32[32,1], index: 2, kind: input, shape index: {}]
  %s3 = inlined_call_operand.hbm [shape: bf16[64,32], index: 3, kind: input, shape index: {}]
  %s4 = inlined_call_operand.hbm [shape: f32[64,1], index: 4, kind: input, shape index: {}]
  %s5 = inlined_call_operand.hbm [shape: bf16[128,64], index: 5, kind: input, shape index: {}]
  %s6 = inlined_call_operand.hbm [shape: f32[128,1], index: 6, kind: input, shape index: {}]
  %s7 = inlined_call_operand.hbm [shape: bf16[64,128], index: 7, kind: input, shape index: {}]
  %s8 = inlined_call_operand.hbm [shape: f32[64,1], index: 8, kind: input, shape index: {}]
  %s9 = inlined_call_operand.hbm [shape: f32[64,1], index: 9, kind: input, shape index: {}]
  %s10 = inlined_call_operand.<no memory space> [shape: f32[1,1], index: 10, kind: input, shape index: {}]
  %s11 = inlined_call_operand.hbm [shape: f32[1,512], index: 11, kind: output, shape index: {}]
  %s12 = sld [smem:[#allocation0]]
  $region94: #{property_mlp.1} parent=0
    _
  %s14 = ssub.s32 1, %s12
  %s15 = scalar_select 0, %s14, %s12
  %v16 = vstv %s10
  %17 = vst [vmem:[#allocation2] sm:$0x1] %v16
  $region1: #{property_mlp.1} parent=0
    #allocation3 [shape = 'u8[16384]{0}', space=vmem, size = 0x4000, scoped, tag = 'input window, operand 0, single buffered']
    #allocation4 [shape = 's32[1]{0}', space=sflag, size = 0x4, scoped, tag = 'scoped memory for property_mlp.1']
    #allocation5 [shape = 's32[1]{0}', space=sflag, size = 0x4, scoped, tag = 'scoped memory for property_mlp.1']
    #allocation6 [shape = 'u8[8192]{0}', space=vmem, size = 0x2000, scoped, tag = 'input window, operand 1, single buffered']
    #allocation7 [shape = 's32[1]{0}', space=sflag, size = 0x4, scoped, tag = 'scoped memory for property_mlp.1']
    #allocation8 [shape = 'u8[16384]{0}', space=vmem, size = 0x4000, scoped, tag = 'input window, operand 2, single buffered']
    #allocation9 [shape = 'u8[16384]{0}', space=vmem, size = 0x4000, scoped, tag = 'input window, operand 3, single buffered']
    #allocation10 [shape = 's32[1]{0}', space=sflag, size = 0x4, scoped, tag = 'scoped memory for property_mlp.1']
    #allocation11 [shape = 'u8[32768]{0}', space=vmem, size = 0x8000, scoped, tag = 'input window, operand 4, single buffered']
    #allocation12 [shape = 'u8[32768]{0}', space=vmem, size = 0x8000, scoped, tag = 'input window, operand 5, single buffered']
    #allocation13 [shape = 's32[1]{0}', space=sflag, size = 0x4, scoped, tag = 'scoped memory for property_mlp.1']
    #allocation14 [shape = 'u8[65536]{0}', space=vmem, size = 0x10000, scoped, tag = 'input window, operand 6, single buffered']
    #allocation15 [shape = 'u8[16384]{0}', space=vmem, size = 0x4000, scoped, tag = 'input window, operand 7, single buffered']
    #allocation16 [shape = 's32[1]{0}', space=sflag, size = 0x4, scoped, tag = 'scoped memory for property_mlp.1']
    #allocation17 [shape = 'u8[32768]{0}', space=vmem, size = 0x8000, scoped, tag = 'input window, operand 8, single buffered']
    #allocation18 [shape = 'u8[32768]{0}', space=vmem, size = 0x8000, scoped, tag = 'input window, operand 9, single buffered']
    #allocation19 [shape = 's32[1]{0}', space=sflag, size = 0x4, scoped, tag = 'scoped memory for property_mlp.1']
    #allocation20 [shape = 'u8[2048]{0}', space=vmem, size = 0x800, scoped, tag = 'output window, operand 0, single buffered']
    %18 = vsyncpa [#allocation4], 0
    %19 = vsyncpa [#allocation7], 0
    %20 = vsyncpa [#allocation10], 0
    %21 = vsyncpa [#allocation13], 0
    %22 = vsyncpa [#allocation16], 0
    %23 = vsyncpa [#allocation19], 0
    %24 = vsyncpa [#allocation5], 0
    // Predicated region
    $region2: #{property_mlp.1} parent=1 // pred_check
      _
    $region3: #{property_mlp.1} parent=1 // pred_check_branch
      %26 = sbr.rel (0) target = $region5
    $region4: #{property_mlp.1} parent=1 // pred_region
      %s28 = ssub.s32 512, 512
      %29 = vsyncadd [#allocation4], %s28
      %s30 = sshll.u32 [#allocation3], 4
      %s31 = int_to_ptr.vmem [resolvable:$true] %s30
      %36 = dma.hbm_to_vmem [thread:$0]  %s0, 512, %s31, [#allocation4], 256, 256, 16
    $region5: #{property_mlp.1} parent=1 // pred_fallthru
      _
    // Predicated region
    $region6: #{property_mlp.1} parent=1 // pred_check
      _
    $region7: #{property_mlp.1} parent=1 // pred_check_branch
      %38 = sbr.rel (0) target = $region9
    $region8: #{property_mlp.1} parent=1 // pred_region
      %s40 = ssub.s32 256, 256
      %41 = vsyncadd [#allocation7], %s40
      %s42 = sshll.u32 [#allocation6], 4
      %s43 = int_to_ptr.vmem [resolvable:$true] %s42
      %48 = dma.hbm_to_vmem [thread:$0]  %s1, 256, %s43, [#allocation7], 64, 64, 4
    $region9: #{property_mlp.1} parent=1 // pred_fallthru
      _
    // Predicated region
    $region10: #{property_mlp.1} parent=1 // pred_check
      _
    $region11: #{property_mlp.1} parent=1 // pred_check_branch
      %50 = sbr.rel (0) target = $region13
    $region12: #{property_mlp.1} parent=1 // pred_region
      %s52 = ssub.s32 512, 512
      %53 = vsyncadd [#allocation7], %s52
      %s54 = sshll.u32 [#allocation8], 4
      %s55 = int_to_ptr.vmem [resolvable:$true] %s54
      %60 = dma.hbm_to_vmem [thread:$0]  %s2, 512, %s55, [#allocation7], 128, 128, 8
    $region13: #{property_mlp.1} parent=1 // pred_fallthru
      _
    // Predicated region
    $region14: #{property_mlp.1} parent=1 // pred_check
      _
    $region15: #{property_mlp.1} parent=1 // pred_check_branch
      %62 = sbr.rel (0) target = $region17
    $region16: #{property_mlp.1} parent=1 // pred_region
      %s64 = ssub.s32 512, 512
      %65 = vsyncadd [#allocation10], %s64
      %s66 = sshll.u32 [#allocation9], 4
      %s67 = int_to_ptr.vmem [resolvable:$true] %s66
      %72 = dma.hbm_to_vmem [thread:$0]  %s3, 512, %s67, [#allocation10], 64, 64, 4
    $region17: #{property_mlp.1} parent=1 // pred_fallthru
      _
    // Predicated region
    $region18: #{property_mlp.1} parent=1 // pred_check
      _
    $region19: #{property_mlp.1} parent=1 // pred_check_branch
      %74 = sbr.rel (0) target = $region21
    $region20: #{property_mlp.1} parent=1 // pred_region
      %s76 = ssub.s32 1024, 1024
      %77 = vsyncadd [#allocation10], %s76
      %s78 = sshll.u32 [#allocation11], 4
      %s79 = int_to_ptr.vmem [resolvable:$true] %s78
      %84 = dma.hbm_to_vmem [thread:$0]  %s4, 1024, %s79, [#allocation10], 128, 128, 8
    $region21: #{property_mlp.1} parent=1 // pred_fallthru
      _
    // Predicated region
    $region22: #{property_mlp.1} parent=1 // pred_check
      _
    $region23: #{property_mlp.1} parent=1 // pred_check_branch
      %86 = sbr.rel (0) target = $region25
    $region24: #{property_mlp.1} parent=1 // pred_region
      %s88 = ssub.s32 1024, 1024
      %89 = vsyncadd [#allocation13], %s88
      %s90 = sshll.u32 [#allocation12], 4
      %s91 = int_to_ptr.vmem [resolvable:$true] %s90
      %96 = dma.hbm_to_vmem [thread:$0]  %s5, 1024, %s91, [#allocation13], 64, 64, 4
    $region25: #{property_mlp.1} parent=1 // pred_fallthru
      _
    // Predicated region
    $region26: #{property_mlp.1} parent=1 // pred_check
      _
    $region27: #{property_mlp.1} parent=1 // pred_check_branch
      %98 = sbr.rel (0) target = $region29
    $region28: #{property_mlp.1} parent=1 // pred_region
      %s100 = ssub.s32 2048, 2048
      %101 = vsyncadd [#allocation13], %s100
      %s102 = sshll.u32 [#allocation14], 4
      %s103 = int_to_ptr.vmem [resolvable:$true] %s102
      %108 = dma.hbm_to_vmem [thread:$0]  %s6, 2048, %s103, [#allocation13], 128, 128, 8
    $region29: #{property_mlp.1} parent=1 // pred_fallthru
      _
    // Predicated region
    $region30: #{property_mlp.1} parent=1 // pred_check
      _
    $region31: #{property_mlp.1} parent=1 // pred_check_branch
      %110 = sbr.rel (0) target = $region33
    $region32: #{property_mlp.1} parent=1 // pred_region
      %s112 = ssub.s32 512, 512
      %113 = vsyncadd [#allocation16], %s112
      %s114 = sshll.u32 [#allocation15], 4
      %s115 = int_to_ptr.vmem [resolvable:$true] %s114
      %120 = dma.hbm_to_vmem [thread:$0]  %s7, 512, %s115, [#allocation16], 64, 64, 4
    $region33: #{property_mlp.1} parent=1 // pred_fallthru
      _
    // Predicated region
    $region34: #{property_mlp.1} parent=1 // pred_check
      _
    $region35: #{property_mlp.1} parent=1 // pred_check_branch
      %122 = sbr.rel (0) target = $region37
    $region36: #{property_mlp.1} parent=1 // pred_region
      %s124 = ssub.s32 1024, 1024
      %125 = vsyncadd [#allocation16], %s124
      %s126 = sshll.u32 [#allocation17], 4
      %s127 = int_to_ptr.vmem [resolvable:$true] %s126
      %132 = dma.hbm_to_vmem [thread:$0]  %s8, 1024, %s127, [#allocation16], 128, 128, 8
    $region37: #{property_mlp.1} parent=1 // pred_fallthru
      _
    // Predicated region
    $region38: #{property_mlp.1} parent=1 // pred_check
      _
    $region39: #{property_mlp.1} parent=1 // pred_check_branch
      %134 = sbr.rel (0) target = $region41
    $region40: #{property_mlp.1} parent=1 // pred_region
      %s136 = ssub.s32 1024, 1024
      %137 = vsyncadd [#allocation19], %s136
      %s138 = sshll.u32 [#allocation18], 4
      %s139 = int_to_ptr.vmem [resolvable:$true] %s138
      %144 = dma.hbm_to_vmem [thread:$0]  %s9, 1024, %s139, [#allocation19], 128, 128, 8
    $region41: #{property_mlp.1} parent=1 // pred_fallthru
      _
    // Predicated region
    $region42: #{property_mlp.1} parent=1 // pred_check
      _
    $region43: #{property_mlp.1} parent=1 // pred_check_branch
      %146 = sbr.rel (0) target = $region45
    $region44: #{property_mlp.1} parent=1 // pred_region
      _
    $region45: #{property_mlp.1} parent=1 // pred_fallthru
      _
    // Predicated region
    $region46: #{property_mlp.1} parent=1 // pred_check
      _
    $region47: #{property_mlp.1} parent=1 // pred_check_branch
      %148 = sbr.rel (0) target = $region49
    $region48: #{property_mlp.1} parent=1 // pred_region
      %149 = dma.done [#allocation4], 512
    $region49: #{property_mlp.1} parent=1 // pred_fallthru
      _
    // Predicated region
    $region50: #{property_mlp.1} parent=1 // pred_check
      _
    $region51: #{property_mlp.1} parent=1 // pred_check_branch
      %151 = sbr.rel (0) target = $region53
    $region52: #{property_mlp.1} parent=1 // pred_region
      %152 = dma.done [#allocation7], 256
    $region53: #{property_mlp.1} parent=1 // pred_fallthru
      _
    // Predicated region
    $region54: #{property_mlp.1} parent=1 // pred_check
      _
    $region55: #{property_mlp.1} parent=1 // pred_check_branch
      %154 = sbr.rel (0) target = $region57
    $region56: #{property_mlp.1} parent=1 // pred_region
      %155 = dma.done [#allocation7], 512
    $region57: #{property_mlp.1} parent=1 // pred_fallthru
      _
    // Predicated region
    $region58: #{property_mlp.1} parent=1 // pred_check
      _
    $region59: #{property_mlp.1} parent=1 // pred_check_branch
      %157 = sbr.rel (0) target = $region61
    $region60: #{property_mlp.1} parent=1 // pred_region
      %158 = dma.done [#allocation10], 512
    $region61: #{property_mlp.1} parent=1 // pred_fallthru
      _
    // Predicated region
    $region62: #{property_mlp.1} parent=1 // pred_check
      _
    $region63: #{property_mlp.1} parent=1 // pred_check_branch
      %160 = sbr.rel (0) target = $region65
    $region64: #{property_mlp.1} parent=1 // pred_region
      %161 = dma.done [#allocation10], 1024
    $region65: #{property_mlp.1} parent=1 // pred_fallthru
      _
    // Predicated region
    $region66: #{property_mlp.1} parent=1 // pred_check
      _
    $region67: #{property_mlp.1} parent=1 // pred_check_branch
      %163 = sbr.rel (0) target = $region69
    $region68: #{property_mlp.1} parent=1 // pred_region
      %164 = dma.done [#allocation13], 1024
    $region69: #{property_mlp.1} parent=1 // pred_fallthru
      _
    // Predicated region
    $region70: #{property_mlp.1} parent=1 // pred_check
      _
    $region71: #{property_mlp.1} parent=1 // pred_check_branch
      %166 = sbr.rel (0) target = $region73
    $region72: #{property_mlp.1} parent=1 // pred_region
      %167 = dma.done [#allocation13], 2048
    $region73: #{property_mlp.1} parent=1 // pred_fallthru
      _
    // Predicated region
    $region74: #{property_mlp.1} parent=1 // pred_check
      _
    $region75: #{property_mlp.1} parent=1 // pred_check_branch
      %169 = sbr.rel (0) target = $region77
    $region76: #{property_mlp.1} parent=1 // pred_region
      %170 = dma.done [#allocation16], 512
    $region77: #{property_mlp.1} parent=1 // pred_fallthru
      _
    // Predicated region
    $region78: #{property_mlp.1} parent=1 // pred_check
      _
    $region79: #{property_mlp.1} parent=1 // pred_check_branch
      %172 = sbr.rel (0) target = $region81
    $region80: #{property_mlp.1} parent=1 // pred_region
      %173 = dma.done [#allocation16], 1024
    $region81: #{property_mlp.1} parent=1 // pred_fallthru
      _
    // Predicated region
    $region82: #{property_mlp.1} parent=1 // pred_check
      _
    $region83: #{property_mlp.1} parent=1 // pred_check_branch
      %175 = sbr.rel (0) target = $region85
    $region84: #{property_mlp.1} parent=1 // pred_region
      %176 = dma.done [#allocation19], 1024
    $region85: #{property_mlp.1} parent=1 // pred_fallthru
      _
    %v178 = vld [vmem:[#allocation6] sm:$0xf]
    %v179 = vld [vmem:[#allocation6 + $0x4] sm:$0xf]
    %v180 = vld [vmem:[#allocation6 + $0x8] sm:$0xf]
    %v181 = vld [vmem:[#allocation6 + $0xc] sm:$0xf]
    %v182 = vld [vmem:[#allocation8] sm:$0xff]
    %v183 = vld [vmem:[#allocation8 + $0x8] sm:$0xff]
    %v184 = vld [vmem:[#allocation8 + $0x10] sm:$0xff]
    %v185 = vld [vmem:[#allocation8 + $0x18] sm:$0xff]
    %v186 = vld [vmem:[#allocation9] sm:$0xf]
    %v187 = vld [vmem:[#allocation9 + $0x4] sm:$0xf]
    %v188 = vld [vmem:[#allocation9 + $0x8] sm:$0xf]
    %v189 = vld [vmem:[#allocation9 + $0xc] sm:$0xf]
    %v190 = vld [vmem:[#allocation9 + $0x10] sm:$0xf]
    %v191 = vld [vmem:[#allocation9 + $0x14] sm:$0xf]
    %v192 = vld [vmem:[#allocation9 + $0x18] sm:$0xf]
    %v193 = vld [vmem:[#allocation9 + $0x1c] sm:$0xf]
    %v194 = vld [vmem:[#allocation11] sm:$0xff]
    %v195 = vld [vmem:[#allocation11 + $0x8] sm:$0xff]
    %v196 = vld [vmem:[#allocation11 + $0x10] sm:$0xff]
    %v197 = vld [vmem:[#allocation11 + $0x18] sm:$0xff]
    %v198 = vld [vmem:[#allocation11 + $0x20] sm:$0xff]
    %v199 = vld [vmem:[#allocation11 + $0x28] sm:$0xff]
    %v200 = vld [vmem:[#allocation11 + $0x30] sm:$0xff]
    %v201 = vld [vmem:[#allocation11 + $0x38] sm:$0xff]
    %v202 = vld [vmem:[#allocation12] sm:$0xf]
    %v203 = vld [vmem:[#allocation12 + $0x4] sm:$0xf]
    %v204 = vld [vmem:[#allocation12 + $0x8] sm:$0xf]
    %v205 = vld [vmem:[#allocation12 + $0xc] sm:$0xf]
    %v206 = vld [vmem:[#allocation12 + $0x10] sm:$0xf]
    %v207 = vld [vmem:[#allocation12 + $0x14] sm:$0xf]
    %v208 = vld [vmem:[#allocation12 + $0x18] sm:$0xf]
    %v209 = vld [vmem:[#allocation12 + $0x1c] sm:$0xf]
    %v210 = vld [vmem:[#allocation12 + $0x20] sm:$0xf]
    %v211 = vld [vmem:[#allocation12 + $0x24] sm:$0xf]
    %v212 = vld [vmem:[#allocation12 + $0x28] sm:$0xf]
    %v213 = vld [vmem:[#allocation12 + $0x2c] sm:$0xf]
    %v214 = vld [vmem:[#allocation12 + $0x30] sm:$0xf]
    %v215 = vld [vmem:[#allocation12 + $0x34] sm:$0xf]
    %v216 = vld [vmem:[#allocation12 + $0x38] sm:$0xf]
    %v217 = vld [vmem:[#allocation12 + $0x3c] sm:$0xf]
    %v218 = vld [vmem:[#allocation14] sm:$0xff]
    %v219 = vld [vmem:[#allocation14 + $0x8] sm:$0xff]
    %v220 = vld [vmem:[#allocation14 + $0x10] sm:$0xff]
    %v221 = vld [vmem:[#allocation14 + $0x18] sm:$0xff]
    %v222 = vld [vmem:[#allocation14 + $0x20] sm:$0xff]
    %v223 = vld [vmem:[#allocation14 + $0x28] sm:$0xff]
    %v224 = vld [vmem:[#allocation14 + $0x30] sm:$0xff]
    %v225 = vld [vmem:[#allocation14 + $0x38] sm:$0xff]
    %v226 = vld [vmem:[#allocation14 + $0x40] sm:$0xff]
    %v227 = vld [vmem:[#allocation14 + $0x48] sm:$0xff]
    %v228 = vld [vmem:[#allocation14 + $0x50] sm:$0xff]
    %v229 = vld [vmem:[#allocation14 + $0x58] sm:$0xff]
    %v230 = vld [vmem:[#allocation14 + $0x60] sm:$0xff]
    %v231 = vld [vmem:[#allocation14 + $0x68] sm:$0xff]
    %v232 = vld [vmem:[#allocation14 + $0x70] sm:$0xff]
    %v233 = vld [vmem:[#allocation14 + $0x78] sm:$0xff]
    %v234 = vld [vmem:[#allocation15] sm:$0xf]
    %v235 = vld [vmem:[#allocation15 + $0x4] sm:$0xf]
    %v236 = vld [vmem:[#allocation15 + $0x8] sm:$0xf]
    %v237 = vld [vmem:[#allocation15 + $0xc] sm:$0xf]
    %v238 = vld [vmem:[#allocation15 + $0x10] sm:$0xf]
    %v239 = vld [vmem:[#allocation15 + $0x14] sm:$0xf]
    %v240 = vld [vmem:[#allocation15 + $0x18] sm:$0xf]
    %v241 = vld [vmem:[#allocation15 + $0x1c] sm:$0xf]
    %v242 = vld [vmem:[#allocation17] sm:$0xff]
    %v243 = vld [vmem:[#allocation17 + $0x8] sm:$0xff]
    %v244 = vld [vmem:[#allocation17 + $0x10] sm:$0xff]
    %v245 = vld [vmem:[#allocation17 + $0x18] sm:$0xff]
    %v246 = vld [vmem:[#allocation17 + $0x20] sm:$0xff]
    %v247 = vld [vmem:[#allocation17 + $0x28] sm:$0xff]
    %v248 = vld [vmem:[#allocation17 + $0x30] sm:$0xff]
    %v249 = vld [vmem:[#allocation17 + $0x38] sm:$0xff]
    %v250 = vld [vmem:[#allocation18] sm:$0xff]
    %v251 = vld [vmem:[#allocation18 + $0x8] sm:$0xff]
    %v252 = vld [vmem:[#allocation18 + $0x10] sm:$0xff]
    %v253 = vld [vmem:[#allocation18 + $0x18] sm:$0xff]
    %v254 = vld [vmem:[#allocation18 + $0x20] sm:$0xff]
    %v255 = vld [vmem:[#allocation18 + $0x28] sm:$0xff]
    %v256 = vld [vmem:[#allocation18 + $0x30] sm:$0xff]
    %v257 = vld [vmem:[#allocation18 + $0x38] sm:$0xff]
    %v258 = vld [vmem:[#allocation2] sm:$0x1]
    %v259 = vld [vmem:[#allocation3] sm:$0xff]
    %v260 = vld [vmem:[#allocation3 + $0x10] sm:$0xff]
    %262 = vset.pattern.permute.xlu0 0
    %263 = vperm.xlu0 %262, %v182
    %v264 = vpop.permute.xlu0 %263
    %267 = vset.pattern.permute.xlu0 0
    %268 = vperm.xlu0 %267, %v183
    %v269 = vpop.permute.xlu0 %268
    %272 = vset.pattern.permute.xlu0 0
    %273 = vperm.xlu0 %272, %v184
    %v274 = vpop.permute.xlu0 %273
    %277 = vset.pattern.permute.xlu0 0
    %278 = vperm.xlu0 %277, %v185
    %v279 = vpop.permute.xlu0 %278
    %v285 = vunpack.c.l.b16 %v178
    %v286 = vunpack.c.l.b16 %v179
    %v287 = vunpack.c.l.b16 %v180
    %v288 = vunpack.c.l.b16 %v181
    %v289 = vpack.c.b16 %v286, %v285
    %v290 = vpack.c.b16 %v288, %v287
    %v293 = vunpack.c.l.b16 %v259
    %v294 = vunpack.c.h.b16 %v259
    %v295 = vunpack.c.l.b16 %v260
    %v296 = vunpack.c.h.b16 %v260
    %v297 = vpack.c.b16 %v295, %v293
    %v298 = vpack.c.b16 %v296, %v294
    %vm301 = vcmask 130048
    %v303 = vsel %vm301, %v289, 0
    %v306 = vsel %vm301, %v290, 0
    %308 = vmatprep.subr.bf16.mxu0 %v298
    %309 = vmatpush1.bf16.msra.mxu0 %v297
    %310 = vmatprep.subr.bf16.mxu0 0
    %311 = vmatpush1.bf16.msra.mxu0 0
    %312 = vmatprep.subr.bf16.mxu0 0
    %313 = vmatpush1.bf16.msra.mxu0 0
    %314 = vmatprep.subr.bf16.mxu0 0
    %315 = vmatpush1.bf16.msra.mxu0 0
    %316 = vmatprep.subr.bf16.mxu0 0
    %317 = vmatpush1.bf16.msra.mxu0 0
    %318 = vmatprep.subr.bf16.mxu0 0
    %319 = vmatpush1.bf16.msra.mxu0 0
    %320 = vmatprep.subr.bf16.mxu0 0
    %321 = vmatpush1.bf16.msra.mxu0 0
    %322 = vmatprep.subr.bf16.mxu0 0
    %323 = vmatpush1.bf16.msra.mxu0 0
    %324 = vmatprep.subr.bf16.mxu0 0
    %325 = vmatpush1.bf16.msra.mxu0 0
    %326 = vmatprep.subr.bf16.mxu0 0
    %327 = vmatpush1.bf16.msra.mxu0 0
    %328 = vmatprep.subr.bf16.mxu0 0
    %329 = vmatpush1.bf16.msra.mxu0 0
    %330 = vmatprep.subr.bf16.mxu0 0
    %331 = vmatpush1.bf16.msra.mxu0 0
    %332 = vmatprep.subr.bf16.mxu0 0
    %333 = vmatpush1.bf16.msra.mxu0 0
    %334 = vmatprep.subr.bf16.mxu0 0
    %335 = vmatpush1.bf16.msra.mxu0 0
    %336 = vmatprep.subr.bf16.mxu0 0
    %337 = vmatpush1.bf16.msra.mxu0 0
    %338 = vmatprep.subr.bf16.mxu0 0
    %339 = vmatpush1.bf16.msra.mxu0 0
    %340 = vmatprep.mubr.bf16.mxu0 0
    %341 = vmatmul.mubr.bf16.gmra.mrb[0].mxu0 %v303
    %v342 = vpop.f32.mrb[0].mxu0
    %v343 = vadd.f32 %v264, %v342
    %v344 = vpop.f32.mrb[0].mxu0
    %v345 = vadd.f32 %v264, %v344
    %v346 = vpop.f32.mrb[0].mxu0
    %v347 = vadd.f32 %v269, %v346
    %v348 = vpop.f32.mrb[0].mxu0
    %v349 = vadd.f32 %v269, %v348
    %350 = vmatprep.mubr.bf16.mxu0 0
    %351 = vmatmul.mubr.bf16.gmra.mrb[0].mxu0 %v306
    %v352 = vpop.f32.mrb[0].mxu0
    %v353 = vadd.f32 %v274, %v352
    %v354 = vpop.f32.mrb[0].mxu0
    %v355 = vadd.f32 %v274, %v354
    %v356 = vpop.f32.mrb[0].mxu0
    %v357 = vadd.f32 %v279, %v356
    %v358 = vpop.f32.mrb[0].mxu0
    %v359 = vadd.f32 %v279, %v358
    %360 = vdwg.mxu0
    %v361 = vmax.f32 %v343, 0.0
    %v362 = vmax.f32 %v345, 0.0
    %v363 = vmax.f32 %v347, 0.0
    %v364 = vmax.f32 %v349, 0.0
    %v365 = vmax.f32 %v353, 0.0
    %v366 = vmax.f32 %v355, 0.0
    %v367 = vmax.f32 %v357, 0.0
    %v368 = vmax.f32 %v359, 0.0
    %v369 = vpack.c.bf16 %v363, %v361
    %v370 = vpack.c.bf16 %v364, %v362
    %v371 = vpack.c.bf16 %v367, %v365
    %v372 = vpack.c.bf16 %v368, %v366
    %374 = vset.pattern.permute.xlu0 0
    %375 = vperm.xlu0 %374, %v194
    %v376 = vpop.permute.xlu0 %375
    %379 = vset.pattern.permute.xlu0 0
    %380 = vperm.xlu0 %379, %v195
    %v381 = vpop.permute.xlu0 %380
    %384 = vset.pattern.permute.xlu0 0
    %385 = vperm.xlu0 %384, %v196
    %v386 = vpop.permute.xlu0 %385
    %389 = vset.pattern.permute.xlu0 0
    %390 = vperm.xlu0 %389, %v197
    %v391 = vpop.permute.xlu0 %390
    %394 = vset.pattern.permute.xlu0 0
    %395 = vperm.xlu0 %394, %v198
    %v396 = vpop.permute.xlu0 %395
    %399 = vset.pattern.permute.xlu0 0
    %400 = vperm.xlu0 %399, %v199
    %v401 = vpop.permute.xlu0 %400
    %404 = vset.pattern.permute.xlu0 0
    %405 = vperm.xlu0 %404, %v200
    %v406 = vpop.permute.xlu0 %405
    %409 = vset.pattern.permute.xlu0 0
    %410 = vperm.xlu0 %409, %v201
    %v411 = vpop.permute.xlu0 %410
    %v421 = vunpack.c.l.b16 %v186
    %v422 = vunpack.c.l.b16 %v187
    %v423 = vunpack.c.l.b16 %v188
    %v424 = vunpack.c.l.b16 %v189
    %v425 = vunpack.c.l.b16 %v190
    %v426 = vunpack.c.l.b16 %v191
    %v427 = vunpack.c.l.b16 %v192
    %v428 = vunpack.c.l.b16 %v193
    %v429 = vpack.c.b16 %v422, %v421
    %v430 = vpack.c.b16 %v424, %v423
    %v431 = vpack.c.b16 %v426, %v425
    %v432 = vpack.c.b16 %v428, %v427
    %vm433 = vcmask 261120
    %v435 = vsel %vm433, %v429, 0
    %v438 = vsel %vm433, %v430, 0
    %v441 = vsel %vm433, %v431, 0
    %v444 = vsel %vm433, %v432, 0
    %446 = vmatprep.subr.bf16.mxu0 %v370
    %447 = vmatpush1.bf16.msra.mxu0 %v369
    %448 = vmatprep.subr.bf16.mxu0 %v372
    %449 = vmatpush1.bf16.msra.mxu0 %v371
    %450 = vmatprep.subr.bf16.mxu0 0
    %451 = vmatpush1.bf16.msra.mxu0 0
    %452 = vmatprep.subr.bf16.mxu0 0
    %453 = vmatpush1.bf16.msra.mxu0 0
    %454 = vmatprep.subr.bf16.mxu0 0
    %455 = vmatpush1.bf16.msra.mxu0 0
    %456 = vmatprep.subr.bf16.mxu0 0
    %457 = vmatpush1.bf16.msra.mxu0 0
    %458 = vmatprep.subr.bf16.mxu0 0
    %459 = vmatpush1.bf16.msra.mxu0 0
    %460 = vmatprep.subr.bf16.mxu0 0
    %461 = vmatpush1.bf16.msra.mxu0 0
    %462 = vmatprep.subr.bf16.mxu0 0
    %463 = vmatpush1.bf16.msra.mxu0 0
    %464 = vmatprep.subr.bf16.mxu0 0
    %465 = vmatpush1.bf16.msra.mxu0 0
    %466 = vmatprep.subr.bf16.mxu0 0
    %467 = vmatpush1.bf16.msra.mxu0 0
    %468 = vmatprep.subr.bf16.mxu0 0
    %469 = vmatpush1.bf16.msra.mxu0 0
    %470 = vmatprep.subr.bf16.mxu0 0
    %471 = vmatpush1.bf16.msra.mxu0 0
    %472 = vmatprep.subr.bf16.mxu0 0
    %473 = vmatpush1.bf16.msra.mxu0 0
    %474 = vmatprep.subr.bf16.mxu0 0
    %475 = vmatpush1.bf16.msra.mxu0 0
    %476 = vmatprep.subr.bf16.mxu0 0
    %477 = vmatpush1.bf16.msra.mxu0 0
    %478 = vmatprep.mubr.bf16.mxu0 0
    %479 = vmatmul.mubr.bf16.gmra.mrb[0].mxu0 %v435
    %v480 = vpop.f32.mrb[0].mxu0
    %v481 = vadd.f32 %v376, %v480
    %v482 = vpop.f32.mrb[0].mxu0
    %v483 = vadd.f32 %v376, %v482
    %v484 = vpop.f32.mrb[0].mxu0
    %v485 = vadd.f32 %v381, %v484
    %v486 = vpop.f32.mrb[0].mxu0
    %v487 = vadd.f32 %v381, %v486
    %488 = vmatprep.mubr.bf16.mxu0 0
    %489 = vmatmul.mubr.bf16.gmra.mrb[0].mxu0 %v438
    %v490 = vpop.f32.mrb[0].mxu0
    %v491 = vadd.f32 %v386, %v490
    %v492 = vpop.f32.mrb[0].mxu0
    %v493 = vadd.f32 %v386, %v492
    %v494 = vpop.f32.mrb[0].mxu0
    %v495 = vadd.f32 %v391, %v494
    %v496 = vpop.f32.mrb[0].mxu0
    %v497 = vadd.f32 %v391, %v496
    %498 = vmatprep.mubr.bf16.mxu0 0
    %499 = vmatmul.mubr.bf16.gmra.mrb[0].mxu0 %v441
    %v500 = vpop.f32.mrb[0].mxu0
    %v501 = vadd.f32 %v396, %v500
    %v502 = vpop.f32.mrb[0].mxu0
    %v503 = vadd.f32 %v396, %v502
    %v504 = vpop.f32.mrb[0].mxu0
    %v505 = vadd.f32 %v401, %v504
    %v506 = vpop.f32.mrb[0].mxu0
    %v507 = vadd.f32 %v401, %v506
    %508 = vmatprep.mubr.bf16.mxu0 0
    %509 = vmatmul.mubr.bf16.gmra.mrb[0].mxu0 %v444
    %v510 = vpop.f32.mrb[0].mxu0
    %v511 = vadd.f32 %v406, %v510
    %v512 = vpop.f32.mrb[0].mxu0
    %v513 = vadd.f32 %v406, %v512
    %v514 = vpop.f32.mrb[0].mxu0
    %v515 = vadd.f32 %v411, %v514
    %v516 = vpop.f32.mrb[0].mxu0
    %v517 = vadd.f32 %v411, %v516
    %518 = vdwg.mxu0
    %v519 = vmax.f32 %v481, 0.0
    %v520 = vmax.f32 %v483, 0.0
    %v521 = vmax.f32 %v485, 0.0
    %v522 = vmax.f32 %v487, 0.0
    %v523 = vmax.f32 %v491, 0.0
    %v524 = vmax.f32 %v493, 0.0
    %v525 = vmax.f32 %v495, 0.0
    %v526 = vmax.f32 %v497, 0.0
    %v527 = vmax.f32 %v501, 0.0
    %v528 = vmax.f32 %v503, 0.0
    %v529 = vmax.f32 %v505, 0.0
    %v530 = vmax.f32 %v507, 0.0
    %v531 = vmax.f32 %v511, 0.0
    %v532 = vmax.f32 %v513, 0.0
    %v533 = vmax.f32 %v515, 0.0
    %v534 = vmax.f32 %v517, 0.0
    %v535 = vpack.c.bf16 %v521, %v519
    %v536 = vpack.c.bf16 %v522, %v520
    %v537 = vpack.c.bf16 %v525, %v523
    %v538 = vpack.c.bf16 %v526, %v524
    %v539 = vpack.c.bf16 %v529, %v527
    %v540 = vpack.c.bf16 %v530, %v528
    %v541 = vpack.c.bf16 %v533, %v531
    %v542 = vpack.c.bf16 %v534, %v532
    %544 = vset.pattern.permute.xlu0 0
    %545 = vperm.xlu0 %544, %v218
    %v546 = vpop.permute.xlu0 %545
    %549 = vset.pattern.permute.xlu0 0
    %550 = vperm.xlu0 %549, %v219
    %v551 = vpop.permute.xlu0 %550
    %554 = vset.pattern.permute.xlu0 0
    %555 = vperm.xlu0 %554, %v220
    %v556 = vpop.permute.xlu0 %555
    %559 = vset.pattern.permute.xlu0 0
    %560 = vperm.xlu0 %559, %v221
    %v561 = vpop.permute.xlu0 %560
    %564 = vset.pattern.permute.xlu0 0
    %565 = vperm.xlu0 %564, %v222
    %v566 = vpop.permute.xlu0 %565
    %569 = vset.pattern.permute.xlu0 0
    %570 = vperm.xlu0 %569, %v223
    %v571 = vpop.permute.xlu0 %570
    %574 = vset.pattern.permute.xlu0 0
    %575 = vperm.xlu0 %574, %v224
    %v576 = vpop.permute.xlu0 %575
    %579 = vset.pattern.permute.xlu0 0
    %580 = vperm.xlu0 %579, %v225
    %v581 = vpop.permute.xlu0 %580
    %584 = vset.pattern.permute.xlu0 0
    %585 = vperm.xlu0 %584, %v226
    %v586 = vpop.permute.xlu0 %585
    %589 = vset.pattern.permute.xlu0 0
    %590 = vperm.xlu0 %589, %v227
    %v591 = vpop.permute.xlu0 %590
    %594 = vset.pattern.permute.xlu0 0
    %595 = vperm.xlu0 %594, %v228
    %v596 = vpop.permute.xlu0 %595
    %599 = vset.pattern.permute.xlu0 0
    %600 = vperm.xlu0 %599, %v229
    %v601 = vpop.permute.xlu0 %600
    %604 = vset.pattern.permute.xlu0 0
    %605 = vperm.xlu0 %604, %v230
    %v606 = vpop.permute.xlu0 %605
    %609 = vset.pattern.permute.xlu0 0
    %610 = vperm.xlu0 %609, %v231
    %v611 = vpop.permute.xlu0 %610
    %614 = vset.pattern.permute.xlu0 0
    %615 = vperm.xlu0 %614, %v232
    %v616 = vpop.permute.xlu0 %615
    %619 = vset.pattern.permute.xlu0 0
    %620 = vperm.xlu0 %619, %v233
    %v621 = vpop.permute.xlu0 %620
    %v639 = vunpack.c.l.b16 %v202
    %v640 = vunpack.c.l.b16 %v203
    %v641 = vunpack.c.l.b16 %v204
    %v642 = vunpack.c.l.b16 %v205
    %v643 = vunpack.c.l.b16 %v206
    %v644 = vunpack.c.l.b16 %v207
    %v645 = vunpack.c.l.b16 %v208
    %v646 = vunpack.c.l.b16 %v209
    %v647 = vunpack.c.l.b16 %v210
    %v648 = vunpack.c.l.b16 %v211
    %v649 = vunpack.c.l.b16 %v212
    %v650 = vunpack.c.l.b16 %v213
    %v651 = vunpack.c.l.b16 %v214
    %v652 = vunpack.c.l.b16 %v215
    %v653 = vunpack.c.l.b16 %v216
    %v654 = vunpack.c.l.b16 %v217
    %v655 = vpack.c.b16 %v640, %v639
    %v656 = vpack.c.b16 %v642, %v641
    %v657 = vpack.c.b16 %v644, %v643
    %v658 = vpack.c.b16 %v646, %v645
    %v659 = vpack.c.b16 %v648, %v647
    %v660 = vpack.c.b16 %v650, %v649
    %v661 = vpack.c.b16 %v652, %v651
    %v662 = vpack.c.b16 %v654, %v653
    %vm663 = vcmask 523264
    %v665 = vsel %vm663, %v655, 0
    %v668 = vsel %vm663, %v656, 0
    %v671 = vsel %vm663, %v657, 0
    %v674 = vsel %vm663, %v658, 0
    %v677 = vsel %vm663, %v659, 0
    %v680 = vsel %vm663, %v660, 0
    %v683 = vsel %vm663, %v661, 0
    %v686 = vsel %vm663, %v662, 0
    %688 = vmatprep.subr.bf16.mxu0 %v536
    %689 = vmatpush1.bf16.msra.mxu0 %v535
    %690 = vmatprep.subr.bf16.mxu0 %v538
    %691 = vmatpush1.bf16.msra.mxu0 %v537
    %692 = vmatprep.subr.bf16.mxu0 %v540
    %693 = vmatpush1.bf16.msra.mxu0 %v539
    %694 = vmatprep.subr.bf16.mxu0 %v542
    %695 = vmatpush1.bf16.msra.mxu0 %v541
    %696 = vmatprep.subr.bf16.mxu0 0
    %697 = vmatpush1.bf16.msra.mxu0 0
    %698 = vmatprep.subr.bf16.mxu0 0
    %699 = vmatpush1.bf16.msra.mxu0 0
    %700 = vmatprep.subr.bf16.mxu0 0
    %701 = vmatpush1.bf16.msra.mxu0 0
    %702 = vmatprep.subr.bf16.mxu0 0
    %703 = vmatpush1.bf16.msra.mxu0 0
    %704 = vmatprep.subr.bf16.mxu0 0
    %705 = vmatpush1.bf16.msra.mxu0 0
    %706 = vmatprep.subr.bf16.mxu0 0
    %707 = vmatpush1.bf16.msra.mxu0 0
    %708 = vmatprep.subr.bf16.mxu0 0
    %709 = vmatpush1.bf16.msra.mxu0 0
    %710 = vmatprep.subr.bf16.mxu0 0
    %711 = vmatpush1.bf16.msra.mxu0 0
    %712 = vmatprep.subr.bf16.mxu0 0
    %713 = vmatpush1.bf16.msra.mxu0 0
    %714 = vmatprep.subr.bf16.mxu0 0
    %715 = vmatpush1.bf16.msra.mxu0 0
    %716 = vmatprep.subr.bf16.mxu0 0
    %717 = vmatpush1.bf16.msra.mxu0 0
    %718 = vmatprep.subr.bf16.mxu0 0
    %719 = vmatpush1.bf16.msra.mxu0 0
    %720 = vmatprep.mubr.bf16.mxu0 0
    %721 = vmatmul.mubr.bf16.gmra.mrb[0].mxu0 %v665
    %v722 = vpop.f32.mrb[0].mxu0
    %v723 = vadd.f32 %v546, %v722
    %v724 = vpop.f32.mrb[0].mxu0
    %v725 = vadd.f32 %v546, %v724
    %v726 = vpop.f32.mrb[0].mxu0
    %v727 = vadd.f32 %v551, %v726
    %v728 = vpop.f32.mrb[0].mxu0
    %v729 = vadd.f32 %v551, %v728
    %730 = vmatprep.mubr.bf16.mxu0 0
    %731 = vmatmul.mubr.bf16.gmra.mrb[0].mxu0 %v668
    %v732 = vpop.f32.mrb[0].mxu0
    %v733 = vadd.f32 %v556, %v732
    %v734 = vpop.f32.mrb[0].mxu0
    %v735 = vadd.f32 %v556, %v734
    %v736 = vpop.f32.mrb[0].mxu0
    %v737 = vadd.f32 %v561, %v736
    %v738 = vpop.f32.mrb[0].mxu0
    %v739 = vadd.f32 %v561, %v738
    %740 = vmatprep.mubr.bf16.mxu0 0
    %741 = vmatmul.mubr.bf16.gmra.mrb[0].mxu0 %v671
    %v742 = vpop.f32.mrb[0].mxu0
    %v743 = vadd.f32 %v566, %v742
    %v744 = vpop.f32.mrb[0].mxu0
    %v745 = vadd.f32 %v566, %v744
    %v746 = vpop.f32.mrb[0].mxu0
    %v747 = vadd.f32 %v571, %v746
    %v748 = vpop.f32.mrb[0].mxu0
    %v749 = vadd.f32 %v571, %v748
    %750 = vmatprep.mubr.bf16.mxu0 0
    %751 = vmatmul.mubr.bf16.gmra.mrb[0].mxu0 %v674
    %v752 = vpop.f32.mrb[0].mxu0
    %v753 = vadd.f32 %v576, %v752
    %v754 = vpop.f32.mrb[0].mxu0
    %v755 = vadd.f32 %v576, %v754
    %v756 = vpop.f32.mrb[0].mxu0
    %v757 = vadd.f32 %v581, %v756
    %v758 = vpop.f32.mrb[0].mxu0
    %v759 = vadd.f32 %v581, %v758
    %760 = vmatprep.mubr.bf16.mxu0 0
    %761 = vmatmul.mubr.bf16.gmra.mrb[0].mxu0 %v677
    %v762 = vpop.f32.mrb[0].mxu0
    %v763 = vadd.f32 %v586, %v762
    %v764 = vpop.f32.mrb[0].mxu0
    %v765 = vadd.f32 %v586, %v764
    %v766 = vpop.f32.mrb[0].mxu0
    %v767 = vadd.f32 %v591, %v766
    %v768 = vpop.f32.mrb[0].mxu0
    %v769 = vadd.f32 %v591, %v768
    %770 = vmatprep.mubr.bf16.mxu0 0
    %771 = vmatmul.mubr.bf16.gmra.mrb[0].mxu0 %v680
    %v772 = vpop.f32.mrb[0].mxu0
    %v773 = vadd.f32 %v596, %v772
    %v774 = vpop.f32.mrb[0].mxu0
    %v775 = vadd.f32 %v596, %v774
    %v776 = vpop.f32.mrb[0].mxu0
    %v777 = vadd.f32 %v601, %v776
    %v778 = vpop.f32.mrb[0].mxu0
    %v779 = vadd.f32 %v601, %v778
    %780 = vmatprep.mubr.bf16.mxu0 0
    %781 = vmatmul.mubr.bf16.gmra.mrb[0].mxu0 %v683
    %v782 = vpop.f32.mrb[0].mxu0
    %v783 = vadd.f32 %v606, %v782
    %v784 = vpop.f32.mrb[0].mxu0
    %v785 = vadd.f32 %v606, %v784
    %v786 = vpop.f32.mrb[0].mxu0
    %v787 = vadd.f32 %v611, %v786
    %v788 = vpop.f32.mrb[0].mxu0
    %v789 = vadd.f32 %v611, %v788
    %790 = vmatprep.mubr.bf16.mxu0 0
    %791 = vmatmul.mubr.bf16.gmra.mrb[0].mxu0 %v686
    %v792 = vpop.f32.mrb[0].mxu0
    %v793 = vadd.f32 %v616, %v792
    %v794 = vpop.f32.mrb[0].mxu0
    %v795 = vadd.f32 %v616, %v794
    %v796 = vpop.f32.mrb[0].mxu0
    %v797 = vadd.f32 %v621, %v796
    %v798 = vpop.f32.mrb[0].mxu0
    %v799 = vadd.f32 %v621, %v798
    %800 = vdwg.mxu0
    %v801 = vmax.f32 %v723, 0.0
    %v802 = vmax.f32 %v725, 0.0
    %v803 = vmax.f32 %v727, 0.0
    %v804 = vmax.f32 %v729, 0.0
    %v805 = vmax.f32 %v733, 0.0
    %v806 = vmax.f32 %v735, 0.0
    %v807 = vmax.f32 %v737, 0.0
    %v808 = vmax.f32 %v739, 0.0
    %v809 = vmax.f32 %v743, 0.0
    %v810 = vmax.f32 %v745, 0.0
    %v811 = vmax.f32 %v747, 0.0
    %v812 = vmax.f32 %v749, 0.0
    %v813 = vmax.f32 %v753, 0.0
    %v814 = vmax.f32 %v755, 0.0
    %v815 = vmax.f32 %v757, 0.0
    %v816 = vmax.f32 %v759, 0.0
    %v817 = vmax.f32 %v763, 0.0
    %v818 = vmax.f32 %v765, 0.0
    %v819 = vmax.f32 %v767, 0.0
    %v820 = vmax.f32 %v769, 0.0
    %v821 = vmax.f32 %v773, 0.0
    %v822 = vmax.f32 %v775, 0.0
    %v823 = vmax.f32 %v777, 0.0
    %v824 = vmax.f32 %v779, 0.0
    %v825 = vmax.f32 %v783, 0.0
    %v826 = vmax.f32 %v785, 0.0
    %v827 = vmax.f32 %v787, 0.0
    %v828 = vmax.f32 %v789, 0.0
    %v829 = vmax.f32 %v793, 0.0
    %v830 = vmax.f32 %v795, 0.0
    %v831 = vmax.f32 %v797, 0.0
    %v832 = vmax.f32 %v799, 0.0
    %v833 = vpack.c.bf16 %v803, %v801
    %v834 = vpack.c.bf16 %v804, %v802
    %v835 = vpack.c.bf16 %v807, %v805
    %v836 = vpack.c.bf16 %v808, %v806
    %v837 = vpack.c.bf16 %v811, %v809
    %v838 = vpack.c.bf16 %v812, %v810
    %v839 = vpack.c.bf16 %v815, %v813
    %v840 = vpack.c.bf16 %v816, %v814
    %v841 = vpack.c.bf16 %v819, %v817
    %v842 = vpack.c.bf16 %v820, %v818
    %v843 = vpack.c.bf16 %v823, %v821
    %v844 = vpack.c.bf16 %v824, %v822
    %v845 = vpack.c.bf16 %v827, %v825
    %v846 = vpack.c.bf16 %v828, %v826
    %v847 = vpack.c.bf16 %v831, %v829
    %v848 = vpack.c.bf16 %v832, %v830
    %850 = vset.pattern.permute.xlu0 0
    %851 = vperm.xlu0 %850, %v242
    %v852 = vpop.permute.xlu0 %851
    %855 = vset.pattern.permute.xlu0 0
    %856 = vperm.xlu0 %855, %v243
    %v857 = vpop.permute.xlu0 %856
    %860 = vset.pattern.permute.xlu0 0
    %861 = vperm.xlu0 %860, %v244
    %v862 = vpop.permute.xlu0 %861
    %865 = vset.pattern.permute.xlu0 0
    %866 = vperm.xlu0 %865, %v245
    %v867 = vpop.permute.xlu0 %866
    %870 = vset.pattern.permute.xlu0 0
    %871 = vperm.xlu0 %870, %v246
    %v872 = vpop.permute.xlu0 %871
    %875 = vset.pattern.permute.xlu0 0
    %876 = vperm.xlu0 %875, %v247
    %v877 = vpop.permute.xlu0 %876
    %880 = vset.pattern.permute.xlu0 0
    %881 = vperm.xlu0 %880, %v248
    %v882 = vpop.permute.xlu0 %881
    %885 = vset.pattern.permute.xlu0 0
    %886 = vperm.xlu0 %885, %v249
    %v887 = vpop.permute.xlu0 %886
    %v897 = vunpack.c.l.b16 %v234
    %v898 = vunpack.c.l.b16 %v235
    %v899 = vunpack.c.l.b16 %v236
    %v900 = vunpack.c.l.b16 %v237
    %v901 = vunpack.c.l.b16 %v238
    %v902 = vunpack.c.l.b16 %v239
    %v903 = vunpack.c.l.b16 %v240
    %v904 = vunpack.c.l.b16 %v241
    %v905 = vpack.c.b16 %v898, %v897
    %v906 = vpack.c.b16 %v900, %v899
    %v907 = vpack.c.b16 %v902, %v901
    %v908 = vpack.c.b16 %v904, %v903
    %913 = vmatprep.subr.bf16.mxu0 %v834
    %914 = vmatpush1.bf16.msra.mxu0 %v833
    %915 = vmatprep.subr.bf16.mxu0 %v836
    %916 = vmatpush1.bf16.msra.mxu0 %v835
    %917 = vmatprep.subr.bf16.mxu0 %v838
    %918 = vmatpush1.bf16.msra.mxu0 %v837
    %919 = vmatprep.subr.bf16.mxu0 %v840
    %920 = vmatpush1.bf16.msra.mxu0 %v839
    %921 = vmatprep.subr.bf16.mxu0 %v842
    %922 = vmatpush1.bf16.msra.mxu0 %v841
    %923 = vmatprep.subr.bf16.mxu0 %v844
    %924 = vmatpush1.bf16.msra.mxu0 %v843
    %925 = vmatprep.subr.bf16.mxu0 %v846
    %926 = vmatpush1.bf16.msra.mxu0 %v845
    %927 = vmatprep.subr.bf16.mxu0 %v848
    %928 = vmatpush1.bf16.msra.mxu0 %v847
    %929 = vmatprep.subr.bf16.mxu0 0
    %930 = vmatpush1.bf16.msra.mxu0 0
    %931 = vmatprep.subr.bf16.mxu0 0
    %932 = vmatpush1.bf16.msra.mxu0 0
    %933 = vmatprep.subr.bf16.mxu0 0
    %934 = vmatpush1.bf16.msra.mxu0 0
    %935 = vmatprep.subr.bf16.mxu0 0
    %936 = vmatpush1.bf16.msra.mxu0 0
    %937 = vmatprep.subr.bf16.mxu0 0
    %938 = vmatpush1.bf16.msra.mxu0 0
    %939 = vmatprep.subr.bf16.mxu0 0
    %940 = vmatpush1.bf16.msra.mxu0 0
    %941 = vmatprep.subr.bf16.mxu0 0
    %942 = vmatpush1.bf16.msra.mxu0 0
    %943 = vmatprep.subr.bf16.mxu0 0
    %944 = vmatpush1.bf16.msra.mxu0 0
    %945 = vmatprep.mubr.bf16.mxu0 0
    %946 = vmatmul.mubr.bf16.gmra.mrb[0].mxu0 %v905
    %v947 = vpop.f32.mrb[0].mxu0
    %v948 = vadd.f32 %v852, %v947
    %v949 = vpop.f32.mrb[0].mxu0
    %v950 = vadd.f32 %v852, %v949
    %v951 = vpop.f32.mrb[0].mxu0
    %v952 = vadd.f32 %v857, %v951
    %v953 = vpop.f32.mrb[0].mxu0
    %v954 = vadd.f32 %v857, %v953
    %955 = vmatprep.mubr.bf16.mxu0 0
    %956 = vmatmul.mubr.bf16.gmra.mrb[0].mxu0 %v906
    %v957 = vpop.f32.mrb[0].mxu0
    %v958 = vadd.f32 %v862, %v957
    %v959 = vpop.f32.mrb[0].mxu0
    %v960 = vadd.f32 %v862, %v959
    %v961 = vpop.f32.mrb[0].mxu0
    %v962 = vadd.f32 %v867, %v961
    %v963 = vpop.f32.mrb[0].mxu0
    %v964 = vadd.f32 %v867, %v963
    %965 = vmatprep.mubr.bf16.mxu0 0
    %966 = vmatmul.mubr.bf16.gmra.mrb[0].mxu0 %v907
    %v967 = vpop.f32.mrb[0].mxu0
    %v968 = vadd.f32 %v872, %v967
    %v969 = vpop.f32.mrb[0].mxu0
    %v970 = vadd.f32 %v872, %v969
    %v971 = vpop.f32.mrb[0].mxu0
    %v972 = vadd.f32 %v877, %v971
    %v973 = vpop.f32.mrb[0].mxu0
    %v974 = vadd.f32 %v877, %v973
    %975 = vmatprep.mubr.bf16.mxu0 0
    %976 = vmatmul.mubr.bf16.gmra.mrb[0].mxu0 %v908
    %v977 = vpop.f32.mrb[0].mxu0
    %v978 = vadd.f32 %v882, %v977
    %v979 = vpop.f32.mrb[0].mxu0
    %v980 = vadd.f32 %v882, %v979
    %v981 = vpop.f32.mrb[0].mxu0
    %v982 = vadd.f32 %v887, %v981
    %v983 = vpop.f32.mrb[0].mxu0
    %v984 = vadd.f32 %v887, %v983
    %985 = vdwg.mxu0
    %v986 = vmax.f32 %v948, 0.0
    %v987 = vmax.f32 %v950, 0.0
    %v988 = vmax.f32 %v952, 0.0
    %v989 = vmax.f32 %v954, 0.0
    %v990 = vmax.f32 %v958, 0.0
    %v991 = vmax.f32 %v960, 0.0
    %v992 = vmax.f32 %v962, 0.0
    %v993 = vmax.f32 %v964, 0.0
    %v994 = vmax.f32 %v968, 0.0
    %v995 = vmax.f32 %v970, 0.0
    %v996 = vmax.f32 %v972, 0.0
    %v997 = vmax.f32 %v974, 0.0
    %v998 = vmax.f32 %v978, 0.0
    %v999 = vmax.f32 %v980, 0.0
    %v1000 = vmax.f32 %v982, 0.0
    %v1001 = vmax.f32 %v984, 0.0
    %1003 = vset.pattern.permute.xlu0 0
    %1004 = vperm.xlu0 %1003, %v250
    %v1005 = vpop.permute.xlu0 %1004
    %1008 = vset.pattern.permute.xlu0 0
    %1009 = vperm.xlu0 %1008, %v251
    %v1010 = vpop.permute.xlu0 %1009
    %1013 = vset.pattern.permute.xlu0 0
    %1014 = vperm.xlu0 %1013, %v252
    %v1015 = vpop.permute.xlu0 %1014
    %1018 = vset.pattern.permute.xlu0 0
    %1019 = vperm.xlu0 %1018, %v253
    %v1020 = vpop.permute.xlu0 %1019
    %1023 = vset.pattern.permute.xlu0 0
    %1024 = vperm.xlu0 %1023, %v254
    %v1025 = vpop.permute.xlu0 %1024
    %1028 = vset.pattern.permute.xlu0 0
    %1029 = vperm.xlu0 %1028, %v255
    %v1030 = vpop.permute.xlu0 %1029
    %1033 = vset.pattern.permute.xlu0 0
    %1034 = vperm.xlu0 %1033, %v256
    %v1035 = vpop.permute.xlu0 %1034
    %1038 = vset.pattern.permute.xlu0 0
    %1039 = vperm.xlu0 %1038, %v257
    %v1040 = vpop.permute.xlu0 %1039
    %v1042 = vmul.f32 %v986, %v1005
    %v1043 = vmul.f32 %v987, %v1005
    %v1044 = vmul.f32 %v988, %v1010
    %v1045 = vmul.f32 %v989, %v1010
    %v1046 = vmul.f32 %v990, %v1015
    %v1047 = vmul.f32 %v991, %v1015
    %v1048 = vmul.f32 %v992, %v1020
    %v1049 = vmul.f32 %v993, %v1020
    %v1050 = vmul.f32 %v994, %v1025
    %v1051 = vmul.f32 %v995, %v1025
    %v1052 = vmul.f32 %v996, %v1030
    %v1053 = vmul.f32 %v997, %v1030
    %v1054 = vmul.f32 %v998, %v1035
    %v1055 = vmul.f32 %v999, %v1035
    %v1056 = vmul.f32 %v1000, %v1040
    %v1057 = vmul.f32 %v1001, %v1040
    %v1058 = vadd.f32 %v1042, %v1044
    %v1059 = vadd.f32 %v1058, %v1046
    %v1060 = vadd.f32 %v1059, %v1048
    %v1061 = vadd.f32 %v1060, %v1050
    %v1062 = vadd.f32 %v1061, %v1052
    %v1063 = vadd.f32 %v1062, %v1054
    %v1064 = vadd.f32 %v1063, %v1056
    %v1065 = vrot.slane %v1064, 4
    %v1066 = vadd.f32 %v1064, %v1065
    %v1067 = vrot.slane %v1066, 2
    %v1068 = vadd.f32 %v1066, %v1067
    %v1069 = vrot.slane %v1068, 1
    %v1070 = vadd.f32 %v1068, %v1069
    %v1071 = vadd.f32 %v1043, %v1045
    %v1072 = vadd.f32 %v1071, %v1047
    %v1073 = vadd.f32 %v1072, %v1049
    %v1074 = vadd.f32 %v1073, %v1051
    %v1075 = vadd.f32 %v1074, %v1053
    %v1076 = vadd.f32 %v1075, %v1055
    %v1077 = vadd.f32 %v1076, %v1057
    %v1078 = vrot.slane %v1077, 4
    %v1079 = vadd.f32 %v1077, %v1078
    %v1080 = vrot.slane %v1079, 2
    %v1081 = vadd.f32 %v1079, %v1080
    %v1082 = vrot.slane %v1081, 1
    %v1083 = vadd.f32 %v1081, %v1082
    %1085 = vset.pattern.permute.xlu0 0
    %1086 = vperm.xlu0 %1085, %v258
    %v1087 = vpop.permute.xlu0 %1086
    %v1089 = vlaneseq
    %v1090 = vshrl.u32 %v1089, 7
    %v1091 = vsub.s32 0, %v1090
    %v1092 = vrot.slane %v1087, %v1091
    %v1093 = vadd.f32 %v1070, %v1092
    %v1094 = vadd.f32 %v1083, %v1092
    %v1097 = vcombine.low %v1093, %v1094
    %v1099 = vunpack.c.l.s4 1966171168
    %v1100 = vunpack.c.0.s8 %v1099
    %v1101 = vlaneseq
    %v1102 = vshrl.u32 %v1101, 7
    %v1103 = vsub.s32 %v1100, %v1102
    %v1104 = vrot.slane %v1097, %v1103
    %v1106 = vunpack.c.l.s4 1966171168
    %v1107 = vunpack.c.0.s8 %v1106
    %v1108 = vlaneseq
    %v1109 = vshrl.u32 %v1108, 7
    %v1110 = vsub.s32 %v1107, %v1109
    %v1111 = vrot.slane %v1104, %v1110
    %v1113 = vlaneseq
    %vm1114 = vcmp.ge.s32.totalorder %v1113, 0
    %vm1115 = vcmp.lt.s32.totalorder %v1113, 256
    %vm1116 = vmand %vm1114, %vm1115
    %1117 = vst.msk [vmem:[#allocation20] sm:$0x3] %vm1116, %v1111
    %s1118 = scalar_lea.vmem [#allocation3], 8
    %v1119 = vld [vmem:[%s1118] sm:$0xff]
    %v1120 = vld [vmem:[%s1118 + $0x10] sm:$0xff]
    %v1123 = vunpack.c.l.b16 %v1119
    %v1124 = vunpack.c.h.b16 %v1119
    %v1125 = vunpack.c.l.b16 %v1120
    %v1126 = vunpack.c.h.b16 %v1120
    %v1127 = vpack.c.b16 %v1125, %v1123
    %v1128 = vpack.c.b16 %v1126, %v1124
    %1131 = vmatprep.subr.bf16.mxu0 %v1128
    %1132 = vmatpush1.bf16.msra.mxu0 %v1127
    %1133 = vmatprep.subr.bf16.mxu0 0
    %1134 = vmatpush1.bf16.msra.mxu0 0
    %1135 = vmatprep.subr.bf16.mxu0 0
    %1136 = vmatpush1.bf16.msra.mxu0 0
    %1137 = vmatprep.subr.bf16.mxu0 0
    %1138 = vmatpush1.bf16.msra.mxu0 0
    %1139 = vmatprep.subr.bf16.mxu0 0
    %1140 = vmatpush1.bf16.msra.mxu0 0
    %1141 = vmatprep.subr.bf16.mxu0 0
    %1142 = vmatpush1.bf16.msra.mxu0 0
    %1143 = vmatprep.subr.bf16.mxu0 0
    %1144 = vmatpush1.bf16.msra.mxu0 0
    %1145 = vmatprep.subr.bf16.mxu0 0
    %1146 = vmatpush1.bf16.msra.mxu0 0
    %1147 = vmatprep.subr.bf16.mxu0 0
    %1148 = vmatpush1.bf16.msra.mxu0 0
    %1149 = vmatprep.subr.bf16.mxu0 0
    %1150 = vmatpush1.bf16.msra.mxu0 0
    %1151 = vmatprep.subr.bf16.mxu0 0
    %1152 = vmatpush1.bf16.msra.mxu0 0
    %1153 = vmatprep.subr.bf16.mxu0 0
    %1154 = vmatpush1.bf16.msra.mxu0 0
    %1155 = vmatprep.subr.bf16.mxu0 0
    %1156 = vmatpush1.bf16.msra.mxu0 0
    %1157 = vmatprep.subr.bf16.mxu0 0
    %1158 = vmatpush1.bf16.msra.mxu0 0
    %1159 = vmatprep.subr.bf16.mxu0 0
    %1160 = vmatpush1.bf16.msra.mxu0 0
    %1161 = vmatprep.subr.bf16.mxu0 0
    %1162 = vmatpush1.bf16.msra.mxu0 0
    %1163 = vmatprep.mubr.bf16.mxu0 0
    %1164 = vmatmul.mubr.bf16.gmra.mrb[0].mxu0 %v303
    %v1165 = vpop.f32.mrb[0].mxu0
    %v1166 = vadd.f32 %v264, %v1165
    %v1167 = vpop.f32.mrb[0].mxu0
    %v1168 = vadd.f32 %v264, %v1167
    %v1169 = vpop.f32.mrb[0].mxu0
    %v1170 = vadd.f32 %v269, %v1169
    %v1171 = vpop.f32.mrb[0].mxu0
    %v1172 = vadd.f32 %v269, %v1171
    %1173 = vmatprep.mubr.bf16.mxu0 0
    %1174 = vmatmul.mubr.bf16.gmra.mrb[0].mxu0 %v306
    %v1175 = vpop.f32.mrb[0].mxu0
    %v1176 = vadd.f32 %v274, %v1175
    %v1177 = vpop.f32.mrb[0].mxu0
    %v1178 = vadd.f32 %v274, %v1177
    %v1179 = vpop.f32.mrb[0].mxu0
    %v1180 = vadd.f32 %v279, %v1179
    %v1181 = vpop.f32.mrb[0].mxu0
    %v1182 = vadd.f32 %v279, %v1181
    %1183 = vdwg.mxu0
    %v1184 = vmax.f32 %v1166, 0.0
    %v1185 = vmax.f32 %v1168, 0.0
    %v1186 = vmax.f32 %v1170, 0.0
    %v1187 = vmax.f32 %v1172, 0.0
    %v1188 = vmax.f32 %v1176, 0.0
    %v1189 = vmax.f32 %v1178, 0.0
    %v1190 = vmax.f32 %v1180, 0.0
    %v1191 = vmax.f32 %v1182, 0.0
    %v1192 = vpack.c.bf16 %v1186, %v1184
    %v1193 = vpack.c.bf16 %v1187, %v1185
    %v1194 = vpack.c.bf16 %v1190, %v1188
    %v1195 = vpack.c.bf16 %v1191, %v1189
    %1196 = vmatprep.subr.bf16.mxu0 %v1193
    %1197 = vmatpush1.bf16.msra.mxu0 %v1192
    %1198 = vmatprep.subr.bf16.mxu0 %v1195
    %1199 = vmatpush1.bf16.msra.mxu0 %v1194
    %1200 = vmatprep.subr.bf16.mxu0 0
    %1201 = vmatpush1.bf16.msra.mxu0 0
    %1202 = vmatprep.subr.bf16.mxu0 0
    %1203 = vmatpush1.bf16.msra.mxu0 0
    %1204 = vmatprep.subr.bf16.mxu0 0
    %1205 = vmatpush1.bf16.msra.mxu0 0
    %1206 = vmatprep.subr.bf16.mxu0 0
    %1207 = vmatpush1.bf16.msra.mxu0 0
    %1208 = vmatprep.subr.bf16.mxu0 0
    %1209 = vmatpush1.bf16.msra.mxu0 0
    %1210 = vmatprep.subr.bf16.mxu0 0
    %1211 = vmatpush1.bf16.msra.mxu0 0
    %1212 = vmatprep.subr.bf16.mxu0 0
    %1213 = vmatpush1.bf16.msra.mxu0 0
    %1214 = vmatprep.subr.bf16.mxu0 0
    %1215 = vmatpush1.bf16.msra.mxu0 0
    %1216 = vmatprep.subr.bf16.mxu0 0
    %1217 = vmatpush1.bf16.msra.mxu0 0
    %1218 = vmatprep.subr.bf16.mxu0 0
    %1219 = vmatpush1.bf16.msra.mxu0 0
    %1220 = vmatprep.subr.bf16.mxu0 0
    %1221 = vmatpush1.bf16.msra.mxu0 0
    %1222 = vmatprep.subr.bf16.mxu0 0
    %1223 = vmatpush1.bf16.msra.mxu0 0
    %1224 = vmatprep.subr.bf16.mxu0 0
    %1225 = vmatpush1.bf16.msra.mxu0 0
    %1226 = vmatprep.subr.bf16.mxu0 0
    %1227 = vmatpush1.bf16.msra.mxu0 0
    %1228 = vmatprep.mubr.bf16.mxu0 0
    %1229 = vmatmul.mubr.bf16.gmra.mrb[0].mxu0 %v435
    %v1230 = vpop.f32.mrb[0].mxu0
    %v1231 = vadd.f32 %v376, %v1230
    %v1232 = vpop.f32.mrb[0].mxu0
    %v1233 = vadd.f32 %v376, %v1232
    %v1234 = vpop.f32.mrb[0].mxu0
    %v1235 = vadd.f32 %v381, %v1234
    %v1236 = vpop.f32.mrb[0].mxu0
    %v1237 = vadd.f32 %v381, %v1236
    %1238 = vmatprep.mubr.bf16.mxu0 0
    %1239 = vmatmul.mubr.bf16.gmra.mrb[0].mxu0 %v438
    %v1240 = vpop.f32.mrb[0].mxu0
    %v1241 = vadd.f32 %v386, %v1240
    %v1242 = vpop.f32.mrb[0].mxu0
    %v1243 = vadd.f32 %v386, %v1242
    %v1244 = vpop.f32.mrb[0].mxu0
    %v1245 = vadd.f32 %v391, %v1244
    %v1246 = vpop.f32.mrb[0].mxu0
    %v1247 = vadd.f32 %v391, %v1246
    %1248 = vmatprep.mubr.bf16.mxu0 0
    %1249 = vmatmul.mubr.bf16.gmra.mrb[0].mxu0 %v441
    %v1250 = vpop.f32.mrb[0].mxu0
    %v1251 = vadd.f32 %v396, %v1250
    %v1252 = vpop.f32.mrb[0].mxu0
    %v1253 = vadd.f32 %v396, %v1252
    %v1254 = vpop.f32.mrb[0].mxu0
    %v1255 = vadd.f32 %v401, %v1254
    %v1256 = vpop.f32.mrb[0].mxu0
    %v1257 = vadd.f32 %v401, %v1256
    %1258 = vmatprep.mubr.bf16.mxu0 0
    %1259 = vmatmul.mubr.bf16.gmra.mrb[0].mxu0 %v444
    %v1260 = vpop.f32.mrb[0].mxu0
    %v1261 = vadd.f32 %v406, %v1260
    %v1262 = vpop.f32.mrb[0].mxu0
    %v1263 = vadd.f32 %v406, %v1262
    %v1264 = vpop.f32.mrb[0].mxu0
    %v1265 = vadd.f32 %v411, %v1264
    %v1266 = vpop.f32.mrb[0].mxu0
    %v1267 = vadd.f32 %v411, %v1266
    %1268 = vdwg.mxu0
    %v1269 = vmax.f32 %v1231, 0.0
    %v1270 = vmax.f32 %v1233, 0.0
    %v1271 = vmax.f32 %v1235, 0.0
    %v1272 = vmax.f32 %v1237, 0.0
    %v1273 = vmax.f32 %v1241, 0.0
    %v1274 = vmax.f32 %v1243, 0.0
    %v1275 = vmax.f32 %v1245, 0.0
    %v1276 = vmax.f32 %v1247, 0.0
    %v1277 = vmax.f32 %v1251, 0.0
    %v1278 = vmax.f32 %v1253, 0.0
    %v1279 = vmax.f32 %v1255, 0.0
    %v1280 = vmax.f32 %v1257, 0.0
    %v1281 = vmax.f32 %v1261, 0.0
    %v1282 = vmax.f32 %v1263, 0.0
    %v1283 = vmax.f32 %v1265, 0.0
    %v1284 = vmax.f32 %v1267, 0.0
    %v1285 = vpack.c.bf16 %v1271, %v1269
    %v1286 = vpack.c.bf16 %v1272, %v1270
    %v1287 = vpack.c.bf16 %v1275, %v1273
    %v1288 = vpack.c.bf16 %v1276, %v1274
    %v1289 = vpack.c.bf16 %v1279, %v1277
    %v1290 = vpack.c.bf16 %v1280, %v1278
    %v1291 = vpack.c.bf16 %v1283, %v1281
    %v1292 = vpack.c.bf16 %v1284, %v1282
    %1293 = vmatprep.subr.bf16.mxu0 %v1286
    %1294 = vmatpush1.bf16.msra.mxu0 %v1285
    %1295 = vmatprep.subr.bf16.mxu0 %v1288
    %1296 = vmatpush1.bf16.msra.mxu0 %v1287
    %1297 = vmatprep.subr.bf16.mxu0 %v1290
    %1298 = vmatpush1.bf16.msra.mxu0 %v1289
    %1299 = vmatprep.subr.bf16.mxu0 %v1292
    %1300 = vmatpush1.bf16.msra.mxu0 %v1291
    %1301 = vmatprep.subr.bf16.mxu0 0
    %1302 = vmatpush1.bf16.msra.mxu0 0
    %1303 = vmatprep.subr.bf16.mxu0 0
    %1304 = vmatpush1.bf16.msra.mxu0 0
    %1305 = vmatprep.subr.bf16.mxu0 0
    %1306 = vmatpush1.bf16.msra.mxu0 0
    %1307 = vmatprep.subr.bf16.mxu0 0
    %1308 = vmatpush1.bf16.msra.mxu0 0
    %1309 = vmatprep.subr.bf16.mxu0 0
    %1310 = vmatpush1.bf16.msra.mxu0 0
    %1311 = vmatprep.subr.bf16.mxu0 0
    %1312 = vmatpush1.bf16.msra.mxu0 0
    %1313 = vmatprep.subr.bf16.mxu0 0
    %1314 = vmatpush1.bf16.msra.mxu0 0
    %1315 = vmatprep.subr.bf16.mxu0 0
    %1316 = vmatpush1.bf16.msra.mxu0 0
    %1317 = vmatprep.subr.bf16.mxu0 0
    %1318 = vmatpush1.bf16.msra.mxu0 0
    %1319 = vmatprep.subr.bf16.mxu0 0
    %1320 = vmatpush1.bf16.msra.mxu0 0
    %1321 = vmatprep.subr.bf16.mxu0 0
    %1322 = vmatpush1.bf16.msra.mxu0 0
    %1323 = vmatprep.subr.bf16.mxu0 0
    %1324 = vmatpush1.bf16.msra.mxu0 0
    %1325 = vmatprep.mubr.bf16.mxu0 0
    %1326 = vmatmul.mubr.bf16.gmra.mrb[0].mxu0 %v665
    %v1327 = vpop.f32.mrb[0].mxu0
    %v1328 = vadd.f32 %v546, %v1327
    %v1329 = vpop.f32.mrb[0].mxu0
    %v1330 = vadd.f32 %v546, %v1329
    %v1331 = vpop.f32.mrb[0].mxu0
    %v1332 = vadd.f32 %v551, %v1331
    %v1333 = vpop.f32.mrb[0].mxu0
    %v1334 = vadd.f32 %v551, %v1333
    %1335 = vmatprep.mubr.bf16.mxu0 0
    %1336 = vmatmul.mubr.bf16.gmra.mrb[0].mxu0 %v668
    %v1337 = vpop.f32.mrb[0].mxu0
    %v1338 = vadd.f32 %v556, %v1337
    %v1339 = vpop.f32.mrb[0].mxu0
    %v1340 = vadd.f32 %v556, %v1339
    %v1341 = vpop.f32.mrb[0].mxu0
    %v1342 = vadd.f32 %v561, %v1341
    %v1343 = vpop.f32.mrb[0].mxu0
    %v1344 = vadd.f32 %v561, %v1343
    %1345 = vmatprep.mubr.bf16.mxu0 0
    %1346 = vmatmul.mubr.bf16.gmra.mrb[0].mxu0 %v671
    %v1347 = vpop.f32.mrb[0].mxu0
    %v1348 = vadd.f32 %v566, %v1347
    %v1349 = vpop.f32.mrb[0].mxu0
    %v1350 = vadd.f32 %v566, %v1349
    %v1351 = vpop.f32.mrb[0].mxu0
    %v1352 = vadd.f32 %v571, %v1351
    %v1353 = vpop.f32.mrb[0].mxu0
    %v1354 = vadd.f32 %v571, %v1353
    %1355 = vmatprep.mubr.bf16.mxu0 0
    %1356 = vmatmul.mubr.bf16.gmra.mrb[0].mxu0 %v674
    %v1357 = vpop.f32.mrb[0].mxu0
    %v1358 = vadd.f32 %v576, %v1357
    %v1359 = vpop.f32.mrb[0].mxu0
    %v1360 = vadd.f32 %v576, %v1359
    %v1361 = vpop.f32.mrb[0].mxu0
    %v1362 = vadd.f32 %v581, %v1361
    %v1363 = vpop.f32.mrb[0].mxu0
    %v1364 = vadd.f32 %v581, %v1363
    %1365 = vmatprep.mubr.bf16.mxu0 0
    %1366 = vmatmul.mubr.bf16.gmra.mrb[0].mxu0 %v677
    %v1367 = vpop.f32.mrb[0].mxu0
    %v1368 = vadd.f32 %v586, %v1367
    %v1369 = vpop.f32.mrb[0].mxu0
    %v1370 = vadd.f32 %v586, %v1369
    %v1371 = vpop.f32.mrb[0].mxu0
    %v1372 = vadd.f32 %v591, %v1371
    %v1373 = vpop.f32.mrb[0].mxu0
    %v1374 = vadd.f32 %v591, %v1373
    %1375 = vmatprep.mubr.bf16.mxu0 0
    %1376 = vmatmul.mubr.bf16.gmra.mrb[0].mxu0 %v680
    %v1377 = vpop.f32.mrb[0].mxu0
    %v1378 = vadd.f32 %v596, %v1377
    %v1379 = vpop.f32.mrb[0].mxu0
    %v1380 = vadd.f32 %v596, %v1379
    %v1381 = vpop.f32.mrb[0].mxu0
    %v1382 = vadd.f32 %v601, %v1381
    %v1383 = vpop.f32.mrb[0].mxu0
    %v1384 = vadd.f32 %v601, %v1383
    %1385 = vmatprep.mubr.bf16.mxu0 0
    %1386 = vmatmul.mubr.bf16.gmra.mrb[0].mxu0 %v683
    %v1387 = vpop.f32.mrb[0].mxu0
    %v1388 = vadd.f32 %v606, %v1387
    %v1389 = vpop.f32.mrb[0].mxu0
    %v1390 = vadd.f32 %v606, %v1389
    %v1391 = vpop.f32.mrb[0].mxu0
    %v1392 = vadd.f32 %v611, %v1391
    %v1393 = vpop.f32.mrb[0].mxu0
    %v1394 = vadd.f32 %v611, %v1393
    %1395 = vmatprep.mubr.bf16.mxu0 0
    %1396 = vmatmul.mubr.bf16.gmra.mrb[0].mxu0 %v686
    %v1397 = vpop.f32.mrb[0].mxu0
    %v1398 = vadd.f32 %v616, %v1397
    %v1399 = vpop.f32.mrb[0].mxu0
    %v1400 = vadd.f32 %v616, %v1399
    %v1401 = vpop.f32.mrb[0].mxu0
    %v1402 = vadd.f32 %v621, %v1401
    %v1403 = vpop.f32.mrb[0].mxu0
    %v1404 = vadd.f32 %v621, %v1403
    %1405 = vdwg.mxu0
    %v1406 = vmax.f32 %v1328, 0.0
    %v1407 = vmax.f32 %v1330, 0.0
    %v1408 = vmax.f32 %v1332, 0.0
    %v1409 = vmax.f32 %v1334, 0.0
    %v1410 = vmax.f32 %v1338, 0.0
    %v1411 = vmax.f32 %v1340, 0.0
    %v1412 = vmax.f32 %v1342, 0.0
    %v1413 = vmax.f32 %v1344, 0.0
    %v1414 = vmax.f32 %v1348, 0.0
    %v1415 = vmax.f32 %v1350, 0.0
    %v1416 = vmax.f32 %v1352, 0.0
    %v1417 = vmax.f32 %v1354, 0.0
    %v1418 = vmax.f32 %v1358, 0.0
    %v1419 = vmax.f32 %v1360, 0.0
    %v1420 = vmax.f32 %v1362, 0.0
    %v1421 = vmax.f32 %v1364, 0.0
    %v1422 = vmax.f32 %v1368, 0.0
    %v1423 = vmax.f32 %v1370, 0.0
    %v1424 = vmax.f32 %v1372, 0.0
    %v1425 = vmax.f32 %v1374, 0.0
    %v1426 = vmax.f32 %v1378, 0.0
    %v1427 = vmax.f32 %v1380, 0.0
    %v1428 = vmax.f32 %v1382, 0.0
    %v1429 = vmax.f32 %v1384, 0.0
    %v1430 = vmax.f32 %v1388, 0.0
    %v1431 = vmax.f32 %v1390, 0.0
    %v1432 = vmax.f32 %v1392, 0.0
    %v1433 = vmax.f32 %v1394, 0.0
    %v1434 = vmax.f32 %v1398, 0.0
    %v1435 = vmax.f32 %v1400, 0.0
    %v1436 = vmax.f32 %v1402, 0.0
    %v1437 = vmax.f32 %v1404, 0.0
    %v1438 = vpack.c.bf16 %v1408, %v1406
    %v1439 = vpack.c.bf16 %v1409, %v1407
    %v1440 = vpack.c.bf16 %v1412, %v1410
    %v1441 = vpack.c.bf16 %v1413, %v1411
    %v1442 = vpack.c.bf16 %v1416, %v1414
    %v1443 = vpack.c.bf16 %v1417, %v1415
    %v1444 = vpack.c.bf16 %v1420, %v1418
    %v1445 = vpack.c.bf16 %v1421, %v1419
    %v1446 = vpack.c.bf16 %v1424, %v1422
    %v1447 = vpack.c.bf16 %v1425, %v1423
    %v1448 = vpack.c.bf16 %v1428, %v1426
    %v1449 = vpack.c.bf16 %v1429, %v1427
    %v1450 = vpack.c.bf16 %v1432, %v1430
    %v1451 = vpack.c.bf16 %v1433, %v1431
    %v1452 = vpack.c.bf16 %v1436, %v1434
    %v1453 = vpack.c.bf16 %v1437, %v1435
    %1454 = vmatprep.subr.bf16.mxu0 %v1439
    %1455 = vmatpush1.bf16.msra.mxu0 %v1438
    %1456 = vmatprep.subr.bf16.mxu0 %v1441
    %1457 = vmatpush1.bf16.msra.mxu0 %v1440
    %1458 = vmatprep.subr.bf16.mxu0 %v1443
    %1459 = vmatpush1.bf16.msra.mxu0 %v1442
    %1460 = vmatprep.subr.bf16.mxu0 %v1445
    %1461 = vmatpush1.bf16.msra.mxu0 %v1444
    %1462 = vmatprep.subr.bf16.mxu0 %v1447
    %1463 = vmatpush1.bf16.msra.mxu0 %v1446
    %1464 = vmatprep.subr.bf16.mxu0 %v1449
    %1465 = vmatpush1.bf16.msra.mxu0 %v1448
    %1466 = vmatprep.subr.bf16.mxu0 %v1451
    %1467 = vmatpush1.bf16.msra.mxu0 %v1450
    %1468 = vmatprep.subr.bf16.mxu0 %v1453
    %1469 = vmatpush1.bf16.msra.mxu0 %v1452
    %1470 = vmatprep.subr.bf16.mxu0 0
    %1471 = vmatpush1.bf16.msra.mxu0 0
    %1472 = vmatprep.subr.bf16.mxu0 0
    %1473 = vmatpush1.bf16.msra.mxu0 0
    %1474 = vmatprep.subr.bf16.mxu0 0
    %1475 = vmatpush1.bf16.msra.mxu0 0
    %1476 = vmatprep.subr.bf16.mxu0 0
    %1477 = vmatpush1.bf16.msra.mxu0 0
    %1478 = vmatprep.subr.bf16.mxu0 0
    %1479 = vmatpush1.bf16.msra.mxu0 0
    %1480 = vmatprep.subr.bf16.mxu0 0
    %1481 = vmatpush1.bf16.msra.mxu0 0
    %1482 = vmatprep.subr.bf16.mxu0 0
    %1483 = vmatpush1.bf16.msra.mxu0 0
    %1484 = vmatprep.subr.bf16.mxu0 0
    %1485 = vmatpush1.bf16.msra.mxu0 0
    %1486 = vmatprep.mubr.bf16.mxu0 0
    %1487 = vmatmul.mubr.bf16.gmra.mrb[0].mxu0 %v905
    %v1488 = vpop.f32.mrb[0].mxu0
    %v1489 = vadd.f32 %v852, %v1488
    %v1490 = vpop.f32.mrb[0].mxu0
    %v1491 = vadd.f32 %v852, %v1490
    %v1492 = vpop.f32.mrb[0].mxu0
    %v1493 = vadd.f32 %v857, %v1492
    %v1494 = vpop.f32.mrb[0].mxu0
    %v1495 = vadd.f32 %v857, %v1494
    %1496 = vmatprep.mubr.bf16.mxu0 0
    %1497 = vmatmul.mubr.bf16.gmra.mrb[0].mxu0 %v906
    %v1498 = vpop.f32.mrb[0].mxu0
    %v1499 = vadd.f32 %v862, %v1498
    %v1500 = vpop.f32.mrb[0].mxu0
    %v1501 = vadd.f32 %v862, %v1500
    %v1502 = vpop.f32.mrb[0].mxu0
    %v1503 = vadd.f32 %v867, %v1502
    %v1504 = vpop.f32.mrb[0].mxu0
    %v1505 = vadd.f32 %v867, %v1504
    %1506 = vmatprep.mubr.bf16.mxu0 0
    %1507 = vmatmul.mubr.bf16.gmra.mrb[0].mxu0 %v907
    %v1508 = vpop.f32.mrb[0].mxu0
    %v1509 = vadd.f32 %v872, %v1508
    %v1510 = vpop.f32.mrb[0].mxu0
    %v1511 = vadd.f32 %v872, %v1510
    %v1512 = vpop.f32.mrb[0].mxu0
    %v1513 = vadd.f32 %v877, %v1512
    %v1514 = vpop.f32.mrb[0].mxu0
    %v1515 = vadd.f32 %v877, %v1514
    %1516 = vmatprep.mubr.bf16.mxu0 0
    %1517 = vmatmul.mubr.bf16.gmra.mrb[0].mxu0 %v908
    %v1518 = vpop.f32.mrb[0].mxu0
    %v1519 = vadd.f32 %v882, %v1518
    %v1520 = vpop.f32.mrb[0].mxu0
    %v1521 = vadd.f32 %v882, %v1520
    %v1522 = vpop.f32.mrb[0].mxu0
    %v1523 = vadd.f32 %v887, %v1522
    %v1524 = vpop.f32.mrb[0].mxu0
    %v1525 = vadd.f32 %v887, %v1524
    %1526 = vdwg.mxu0
    %v1527 = vmax.f32 %v1489, 0.0
    %v1528 = vmax.f32 %v1491, 0.0
    %v1529 = vmax.f32 %v1493, 0.0
    %v1530 = vmax.f32 %v1495, 0.0
    %v1531 = vmax.f32 %v1499, 0.0
    %v1532 = vmax.f32 %v1501, 0.0
    %v1533 = vmax.f32 %v1503, 0.0
    %v1534 = vmax.f32 %v1505, 0.0
    %v1535 = vmax.f32 %v1509, 0.0
    %v1536 = vmax.f32 %v1511, 0.0
    %v1537 = vmax.f32 %v1513, 0.0
    %v1538 = vmax.f32 %v1515, 0.0
    %v1539 = vmax.f32 %v1519, 0.0
    %v1540 = vmax.f32 %v1521, 0.0
    %v1541 = vmax.f32 %v1523, 0.0
    %v1542 = vmax.f32 %v1525, 0.0
    %v1543 = vmul.f32 %v1527, %v1005
    %v1544 = vmul.f32 %v1528, %v1005
    %v1545 = vmul.f32 %v1529, %v1010
    %v1546 = vmul.f32 %v1530, %v1010
    %v1547 = vmul.f32 %v1531, %v1015
    %v1548 = vmul.f32 %v1532, %v1015
    %v1549 = vmul.f32 %v1533, %v1020
    %v1550 = vmul.f32 %v1534, %v1020
    %v1551 = vmul.f32 %v1535, %v1025
    %v1552 = vmul.f32 %v1536, %v1025
    %v1553 = vmul.f32 %v1537, %v1030
    %v1554 = vmul.f32 %v1538, %v1030
    %v1555 = vmul.f32 %v1539, %v1035
    %v1556 = vmul.f32 %v1540, %v1035
    %v1557 = vmul.f32 %v1541, %v1040
    %v1558 = vmul.f32 %v1542, %v1040
    %v1559 = vadd.f32 %v1543, %v1545
    %v1560 = vadd.f32 %v1559, %v1547
    %v1561 = vadd.f32 %v1560, %v1549
    %v1562 = vadd.f32 %v1561, %v1551
    %v1563 = vadd.f32 %v1562, %v1553
    %v1564 = vadd.f32 %v1563, %v1555
    %v1565 = vadd.f32 %v1564, %v1557
    %v1566 = vrot.slane %v1565, 4
    %v1567 = vadd.f32 %v1565, %v1566
    %v1568 = vrot.slane %v1567, 2
    %v1569 = vadd.f32 %v1567, %v1568
    %v1570 = vrot.slane %v1569, 1
    %v1571 = vadd.f32 %v1569, %v1570
    %v1572 = vadd.f32 %v1544, %v1546
    %v1573 = vadd.f32 %v1572, %v1548
    %v1574 = vadd.f32 %v1573, %v1550
    %v1575 = vadd.f32 %v1574, %v1552
    %v1576 = vadd.f32 %v1575, %v1554
    %v1577 = vadd.f32 %v1576, %v1556
    %v1578 = vadd.f32 %v1577, %v1558
    %v1579 = vrot.slane %v1578, 4
    %v1580 = vadd.f32 %v1578, %v1579
    %v1581 = vrot.slane %v1580, 2
    %v1582 = vadd.f32 %v1580, %v1581
    %v1583 = vrot.slane %v1582, 1
    %v1584 = vadd.f32 %v1582, %v1583
    %v1585 = vadd.f32 %v1571, %v1092
    %v1586 = vadd.f32 %v1584, %v1092
    %v1589 = vcombine.low %v1585, %v1586
    %v1591 = vunpack.c.l.s4 1966171168
    %v1592 = vunpack.c.0.s8 %v1591
    %v1593 = vlaneseq
    %v1594 = vshrl.u32 %v1593, 7
    %v1595 = vsub.s32 %v1592, %v1594
    %v1596 = vrot.slane %v1589, %v1595
    %v1598 = vunpack.c.l.s4 1966171168
    %v1599 = vunpack.c.0.s8 %v1598
    %v1600 = vlaneseq
    %v1601 = vshrl.u32 %v1600, 7
    %v1602 = vsub.s32 %v1599, %v1601
    %v1603 = vrot.slane %v1596, %v1602
    %s1605 = scalar_lea.vmem [#allocation20], 2
    %1606 = vst.msk [vmem:[%s1605] sm:$0x3] %vm1116, %v1603
    // Predicated region
    $region86: #{property_mlp.1} parent=1 // pred_check
      _
    $region87: #{property_mlp.1} parent=1 // pred_check_branch
      %1608 = sbr.rel (0) target = $region89
    $region88: #{property_mlp.1} parent=1 // pred_region
      %s1610 = ssub.s32 64, 64
      %1611 = vsyncadd [#allocation5], %s1610
      %s1613 = sshll.u32 [#allocation20], 4
      %s1614 = int_to_ptr.vmem [resolvable:$true] %s1613
      %1616 = dma.vmem_to_hbm [thread:$0]  %s1614, 64, %s11, [#allocation5]
    $region89: #{property_mlp.1} parent=1 // pred_fallthru
      _
    // Predicated region
    $region90: #{property_mlp.1} parent=1 // pred_check
      _
    $region91: #{property_mlp.1} parent=1 // pred_check_branch
      %1618 = sbr.rel (0) target = $region93
    $region92: #{property_mlp.1} parent=1 // pred_region
      %1619 = dma.done [#allocation5], 64
    $region93: #{property_mlp.1} parent=1 // pred_fallthru
      _
    %1620 = vsyncpa [#allocation4], 1
    %1621 = vsyncpa [#allocation7], 1
    %1622 = vsyncpa [#allocation10], 1
    %1623 = vsyncpa [#allocation13], 1
    %1624 = vsyncpa [#allocation16], 1
    %1625 = vsyncpa [#allocation19], 1
    %1626 = vsyncpa [#allocation5], 1

</llo_original>
